<compile_context>
chip_gen: v7x
topology: tpu7x:2x2x1
jax: 0.10.0
libtpu: 0.0.40
codegen_flags: <defaults>
</compile_context>

<pallas_src>
import numpy as np
import jax
import jax.numpy as jnp
from jax import lax
from jax.experimental import pallas as pl
from jax.experimental.pallas import tpu as pltpu

TWOPI = 2.0 * np.pi


def _round_up(x, m):
    return -(-x // m) * m


def _balanced_tile(total, max_tile, align):
    """Split `total` into equal tiles <= max_tile, each rounded up to `align`."""
    total = max(int(total), 1)
    n_tiles = -(-total // max_tile)
    tile = _round_up(-(-total // n_tiles), align)
    return tile, n_tiles


def _tile_config():
    """Generation-aware tile sizes and scoped-VMEM limit.

    v5e/v6e: 128 MiB VMEM per TensorCore -> large tiles amortize the ~0.35us
    per-grid-step overhead.  v7x: 64 MiB -> smaller tiles, tighter limit.
    Unknown hardware falls back to the v7x-safe (smaller) configuration.
    """
    vmem_cap = 0
    try:
        info = pltpu.get_tpu_info()
        vmem_cap = int(getattr(info, "vmem_capacity_bytes", 0))
    except Exception:
        pass
    if vmem_cap >= 96 * 1024 * 1024:          # v5e / v6e (128 MiB)
        return 512, 512, 100 * 1024 * 1024    # node_tile, k_tile, vmem_limit
    return 256, 256, 48 * 1024 * 1024         # v7x (64 MiB) or unknown


# ----------------------------- Pallas kernels -------------------------------


def _fwd_transform_kernel(r_ref, kfT_ref, kvec_ref, vvec_ref,
                          kabs_ref, vre_ref, vim_ref,
                          kim_acc, vre_acc, vim_acc):
    """Phase 1: accumulate forward Ewald transforms over node tiles (one k tile)."""
    f32 = jnp.float32
    i = pl.program_id(2)

    @pl.when(i == 0)
    def _init():
        kabs_ref[...] = jnp.zeros_like(kabs_ref)   # doubles as the k_re accumulator
        kim_acc[...] = jnp.zeros_like(kim_acc)
        vre_acc[...] = jnp.zeros_like(vre_acc)
        vim_acc[...] = jnp.zeros_like(vim_acc)

    # Phases k'.r for this (node tile, k tile): exact f32 FMAs on the VPU.
    # Avoids any dot-precision ambiguity for arguments up to ~100 rad that feed
    # cos/sin, and keeps the MXU slot free for the big A^T @ B dots below.
    r = r_ref[...]                                   # (tN, 8)   f32
    kf = kfT_ref[...]                                # (8, tK)   f32
    ph = (r[:, 0:1] * kf[0:1, :]
          + r[:, 1:2] * kf[1:2, :]
          + r[:, 2:3] * kf[2:3, :])                  # (tN, tK)  f32
    cf = jnp.cos(ph)
    sf = jnp.sin(ph)

    dn_cc = (((0,), (0,)), ((), ()))                 # contract node dim: A^T @ B

    # k-path: f32 operands / f32 accumulation (Mosaic lowers f32 matmuls natively;
    # |k_pot| feeds the softmax logits where relative error is amplified).
    # TODO(synk): if profiling shows this MXU-bound, swap in a compensated bf16
    # hi/lo split of cf/sf (2-3 bf16 passes) instead of the native f32 matmul.
    kvec = kvec_ref[...]
    kabs_ref[...] += lax.dot_general(cf, kvec, dn_cc, preferred_element_type=f32)
    kim_acc[...] += lax.dot_general(sf, kvec, dn_cc, preferred_element_type=f32)

    # v-path: bf16 MXU operands + f32 accumulation (native MXU mode); error lands
    # directly on the output, not through the softmax.
    vvb = vvec_ref[...].astype(jnp.bfloat16)
    vre_acc[...] += lax.dot_general(cf.astype(jnp.bfloat16), vvb, dn_cc,
                                    preferred_element_type=f32)
    vim_acc[...] += lax.dot_general(sf.astype(jnp.bfloat16), vvb, dn_cc,
                                    preferred_element_type=f32)

    @pl.when(i == pl.num_programs(2) - 1)
    def _finalize():
        kr = kabs_ref[...]
        ki = kim_acc[...]
        kabs_ref[...] = jnp.sqrt(kr * kr + ki * ki)
        vre_ref[...] = vre_acc[...].astype(vre_ref.dtype)
        vim_ref[...] = vim_acc[...].astype(vim_ref.dtype)


def _attn_inverse_kernel(r_ref, kiT_ref, q_ref, kabs_ref, vre_ref, vim_ref,
                         maskadd_ref, out_ref):
    """Phase 2: attention over k-points + inverse transform for one node tile."""
    f32 = jnp.float32

    # attention logits: |q_pot| = |q| * |e^{ik.r}| and |e^{ik.r}| == 1 exactly.
    q_abs = jnp.abs(q_ref[...])                                   # (tN, Fp)
    dn_rr = (((1,), (1,)), ((), ()))                              # contract F: A @ B^T
    att = lax.dot_general(q_abs, kabs_ref[...], dn_rr,
                          preferred_element_type=f32)             # (tN, Kp)
    att = att + maskadd_ref[...]                                  # additive 0 / -1e30 pad mask

    # masked softmax with deferred normalization; exp(-1e30 - m) == 0 exactly for
    # padded k, so no extra 0/1 mask multiply is needed.
    m = jnp.max(att, axis=-1, keepdims=True)
    p = jnp.exp(att - m)                                          # unnormalized weights
    denom = jnp.sum(p, axis=-1, keepdims=True)                    # (tN, 1)
    # guard: a graph with zero valid k-points would give denom == 0 -> NaN
    inv = pl.reciprocal(jnp.maximum(denom, f32(1e-20)), approx=True)

    # inverse transform phases theta = k.r (true, unshifted wave numbers), f32 VPU FMAs
    r = r_ref[...]
    ki = kiT_ref[...]
    ph = (r[:, 0:1] * ki[0:1, :]
          + r[:, 1:2] * ki[1:2, :]
          + r[:, 2:3] * ki[2:3, :])                               # (tN, Kp)
    # Re[ sum_k p * (v_re + i v_im) * e^{-i theta} ] = (p cos)@v_re + (p sin)@v_im
    pc = (p * jnp.cos(ph)).astype(jnp.bfloat16)
    ps = (p * jnp.sin(ph)).astype(jnp.bfloat16)
    num = (jnp.dot(pc, vre_ref[...], preferred_element_type=f32)
           + jnp.dot(ps, vim_ref[...], preferred_element_type=f32))
    # TODO(synk): for very large Kp on v7x, restructure as a flash-style online
    # softmax over k-chunks so the (tN, Kp) temporaries become Kp-independent.
    out_ref[...] = num * inv                                      # lane-dense (Fp % 128 == 0)


# ------------------------------ pallas_call glue -----------------------------


def _ewald_pallas(r2pi, kfT, kiT, qs, ks, vs, maskadd, tile_n, tile_k, vmem_limit):
    G, n_pad, f_pad = qs.shape
    k_pad = kfT.shape[-1]
    n_tiles = n_pad // tile_n
    k_tiles = k_pad // tile_k

    fwd_cost = pl.CostEstimate(
        flops=int(2 * G * n_pad * k_pad * (4 * f_pad + 3)),
        transcendentals=int(2 * G * n_pad * k_pad),
        bytes_accessed=int(4 * (r2pi.size + kfT.size + qs.size + vs.size)
                           + G * k_pad * f_pad * (4 + 2 + 2)),
    )
    k_abs, v_re, v_im = pl.pallas_call(
        _fwd_transform_kernel,
        grid=(G, k_tiles, n_tiles),
        in_specs=[
            pl.BlockSpec((None, tile_n, 8), lambda g, kt, i: (g, i, 0)),       # 2*pi*frac positions
            pl.BlockSpec((None, 8, tile_k), lambda g, kt, i: (g, 0, kt)),      # shifted k vectors^T
            pl.BlockSpec((None, tile_n, f_pad), lambda g, kt, i: (g, i, 0)),   # k features
            pl.BlockSpec((None, tile_n, f_pad), lambda g, kt, i: (g, i, 0)),   # v features
        ],
        out_specs=[
            pl.BlockSpec((None, tile_k, f_pad), lambda g, kt, i: (g, kt, 0)),  # |k_pot| (acc in-place)
            pl.BlockSpec((None, tile_k, f_pad), lambda g, kt, i: (g, kt, 0)),  # Re v_pot
            pl.BlockSpec((None, tile_k, f_pad), lambda g, kt, i: (g, kt, 0)),  # Im v_pot
        ],
        out_shape=[
            jax.ShapeDtypeStruct((G, k_pad, f_pad), jnp.float32),
            jax.ShapeDtypeStruct((G, k_pad, f_pad), jnp.bfloat16),
            jax.ShapeDtypeStruct((G, k_pad, f_pad), jnp.bfloat16),
        ],
        scratch_shapes=[pltpu.VMEM((tile_k, f_pad), jnp.float32)] * 3,
        compiler_params=pltpu.CompilerParams(
            dimension_semantics=("parallel", "parallel", "arbitrary"),
            vmem_limit_bytes=vmem_limit),
        cost_estimate=fwd_cost,
    )(r2pi, kfT, ks, vs)

    inv_cost = pl.CostEstimate(
        flops=int(G * n_pad * k_pad * (6 * f_pad + 12)),
        transcendentals=int(3 * G * n_pad * k_pad),
        bytes_accessed=int(4 * (r2pi.size + kiT.size + qs.size + maskadd.size)
                           + G * k_pad * f_pad * (4 + 2 + 2)
                           + 4 * G * n_pad * f_pad),
    )
    out = pl.pallas_call(
        _attn_inverse_kernel,
        grid=(G, n_tiles),
        in_specs=[
            pl.BlockSpec((None, tile_n, 8), lambda g, i: (g, i, 0)),       # positions
            pl.BlockSpec((None, 8, k_pad), lambda g, i: (g, 0, 0)),        # true k vectors^T
            pl.BlockSpec((None, tile_n, f_pad), lambda g, i: (g, i, 0)),   # q features
            # TODO(synk): these three (Kp, Fp) blocks only change once per graph;
            # on v7x mark them pipeline_mode=pl.Buffered(1) to reclaim the
            # second pipeline buffer (~2 MiB) for a larger node tile.
            pl.BlockSpec((None, k_pad, f_pad), lambda g, i: (g, 0, 0)),    # |k_pot|
            pl.BlockSpec((None, k_pad, f_pad), lambda g, i: (g, 0, 0)),    # Re v_pot
            pl.BlockSpec((None, k_pad, f_pad), lambda g, i: (g, 0, 0)),    # Im v_pot
            pl.BlockSpec((None, 1, k_pad), lambda g, i: (g, 0, 0)),        # additive -1e30 mask
        ],
        out_specs=pl.BlockSpec((None, tile_n, f_pad), lambda g, i: (g, i, 0)),
        out_shape=jax.ShapeDtypeStruct((G, n_pad, f_pad), jnp.float32),
        compiler_params=pltpu.CompilerParams(
            dimension_semantics=("parallel", "parallel"),
            vmem_limit_bytes=vmem_limit),
        cost_estimate=inv_cost,
    )(r2pi, kiT, qs, k_abs, v_re, v_im, maskadd)
    return out


# ------------------------------ host-side glue ------------------------------


def _k_points(box, dl):
    """Enumerate valid k-points exactly like the PyTorch reference (host-side)."""
    nk = [max(1, int(float(b) / dl)) for b in box]
    kx = np.arange(nk[0] + 1)
    ky = np.arange(-nk[1], nk[1] + 1)
    kz = np.arange(-nk[2], nk[2] + 1)
    KX, KY, KZ = np.meshgrid(kx, ky, kz, indexing="ij")
    k_sq = (TWOPI ** 2) * ((KX / box[0]) ** 2 + (KY / box[1]) ** 2 + (KZ / box[2]) ** 2)
    k_sq_max = (TWOPI / dl) ** 2
    valid = (k_sq <= k_sq_max) & (k_sq > 0)
    kxv, kyv, kzv = KX[valid], KY[valid], KZ[valid]      # row-major == torch.nonzero order
    # reproduce `k_vectors - 1` (with PyTorch negative-index wrap) used in the forward transform
    ax = (kxv - 1) % (nk[0] + 1)
    bx = (kyv + nk[1] - 1) % (2 * nk[1] + 1)
    cx = (kzv + nk[2] - 1) % (2 * nk[2] + 1)
    k_fwd = np.stack([ax, bx - nk[1], cx - nk[2]], axis=1).astype(np.float64)
    k_inv = np.stack([kxv, kyv, kzv], axis=1).astype(np.float64)
    return k_fwd, k_inv


def ewald_potential_forward(q_vector, k_vector, v_vector, positions, cell, batch,
                            dl=4.0, sigma=5.0):
    """Pallas implementation of EwaldPotential.forward (returns [n_nodes, F] float32)."""
    del sigma  # only feeds `kfac` in the reference, which is computed but never applied
    q = np.asarray(q_vector, np.float32)
    k = np.asarray(k_vector, np.float32)
    v = np.asarray(v_vector, np.float32)
    pos = np.asarray(positions, np.float64)
    batch = np.asarray(batch)
    cell = np.asarray(cell, np.float64).reshape(-1, 3, 3)
    boxes = np.diagonal(cell, axis1=-2, axis2=-1)

    feat = q.shape[1]
    graph_ids = np.unique(batch)
    G = len(graph_ids)

    masks, kfs, kis = [], [], []
    for b in graph_ids:
        m = batch == b
        masks.append(m)
        kf, ki = _k_points(boxes[int(b)], dl)
        kfs.append(kf)
        kis.append(ki)

    node_tile_max, k_tile_max, vmem_limit = _tile_config()

    # TODO(synk): production should bucket graphs by (n, K) size class instead of
    # padding every graph to the global maximum.
    max_n = max(int(m.sum()) for m in masks)
    max_k = max(kf.shape[0] for kf in kfs)
    # Balanced tiles: equal-sized tiles <= the generation cap keep pad waste below
    # one alignment unit per tile (no whole tiles of zero rows).
    tile_n, n_tiles = _balanced_tile(max_n, node_tile_max, 8)
    n_pad = tile_n * n_tiles
    tile_k, k_tiles = _balanced_tile(max_k, k_tile_max, 128)
    k_pad = tile_k * k_tiles
    # Lane-dense stores: pad the feature dim to a multiple of 128 so all (.., F)
    # stores are unmasked full-lane vst; zero feature columns are inert everywhere.
    f_pad = _round_up(feat, 128)

    qs = np.zeros((G, n_pad, f_pad), np.float32)
    ks = np.zeros((G, n_pad, f_pad), np.float32)
    vs = np.zeros((G, n_pad, f_pad), np.float32)
    r2pi = np.zeros((G, n_pad, 8), np.float32)
    kfT = np.zeros((G, 8, k_pad), np.float32)
    kiT = np.zeros((G, 8, k_pad), np.float32)
    maskadd = np.full((G, 1, k_pad), -1e30, np.float32)
    n_per = []
    for gi, b in enumerate(graph_ids):
        m = masks[gi]
        n_g = int(m.sum())
        K_g = kfs[gi].shape[0]
        n_per.append(n_g)
        box = boxes[int(b)]
        qs[gi, :n_g, :feat] = q[m]
        ks[gi, :n_g, :feat] = k[m]       # zero-padded rows keep the phase-1 accumulators clean
        vs[gi, :n_g, :feat] = v[m]
        r2pi[gi, :n_g, :3] = (TWOPI * pos[m] / box[None, :]).astype(np.float32)
        kfT[gi, :3, :K_g] = kfs[gi].T
        kiT[gi, :3, :K_g] = kis[gi].T
        maskadd[gi, 0, :K_g] = 0.0

    out = _ewald_pallas(r2pi, kfT, kiT, qs, ks, vs, maskadd, tile_n, tile_k, vmem_limit)
    # concatenate valid rows per graph in unique-batch order (matches torch.cat in ref)
    return jnp.concatenate([out[gi, :n_per[gi], :feat] for gi in range(G)], axis=0)


# ------------------------- numpy reference (float64) ------------------------


def ewald_reference(q, k, v, positions, cell, batch, dl=4.0):
    batch = np.asarray(batch)
    cell = np.asarray(cell, np.float64).reshape(-1, 3, 3)
    boxes = np.diagonal(cell, axis1=-2, axis2=-1)
    q = np.asarray(q, np.float64)
    k = np.asarray(k, np.float64)
    v = np.asarray(v, np.float64)
    positions = np.asarray(positions, np.float64)
    outs = []
    for b in np.unique(batch):
        m = batch == b
        box = boxes[int(b)]
        k_fwd, k_inv = _k_points(box, dl)
        rf = positions[m] / box[None, :]
        ph_f = np.exp(1j * TWOPI * rf @ k_fwd.T)      # (n, K)
        ph_i = np.exp(-1j * TWOPI * rf @ k_inv.T)     # (n, K)
        k_pot = ph_f.T @ k[m]                         # (K, F)
        v_pot = ph_f.T @ v[m]                         # (K, F)
        att = (np.abs(q[m])[:, None, :] * np.abs(ph_f)[:, :, None]
               * np.abs(k_pot)[None, :, :]).sum(-1)   # (n, K)
        att = att - att.max(-1, keepdims=True)
        e = np.exp(att - att.max(-1, keepdims=True))
        w = e / e.sum(-1, keepdims=True)
        outs.append(np.real(np.einsum("nk,kf,nk->nf", w, v_pot, ph_i)))
    return np.concatenate(outs, axis=0)


# ---------------------------------- main ------------------------------------


if __name__ == "__main__":
    key = jax.random.PRNGKey(0)
    n_per_graph, feat = 16, 32
    n_graphs = 2
    n = n_per_graph * n_graphs
    batch = np.repeat(np.arange(n_graphs), n_per_graph)

    cells = np.zeros((n_graphs, 3, 3), np.float32)
    cells[0] = np.diag([12.0, 12.0, 12.0]).astype(np.float32)
    cells[1] = np.diag([10.0, 13.0, 11.0]).astype(np.float32)
    boxes = np.diagonal(cells, axis1=-2, axis2=-1)

    kq, kk, kv, kr = jax.random.split(key, 4)
    q = 0.5 * jax.random.normal(kq, (n, feat), jnp.float32)
    kvec = 0.5 * jax.random.normal(kk, (n, feat), jnp.float32)
    vvec = 0.5 * jax.random.normal(kv, (n, feat), jnp.float32)
    frac = jax.random.uniform(kr, (n, 3), jnp.float32)
    positions = np.asarray(frac) * boxes[batch]

    out = ewald_potential_forward(q, kvec, vvec, positions, cells, batch, dl=4.0, sigma=5.0)
    out = jax.block_until_ready(out)

    ref = ewald_reference(q, kvec, vvec, positions, cells, batch, dl=4.0)
    np.testing.assert_allclose(np.asarray(out), ref, rtol=2e-2, atol=2e-2)
    print("KERNEL_OK")
</pallas_src>

<mosaic_0001>
module attributes {stable_mosaic.version = 11 : i64} {
  func.func @_fwd_transform_kernel(%arg0: i32, %arg1: i32, %arg2: i32, %arg3: memref<1x16x8xf32, #tpu.memory_space<vmem>>, %arg4: memref<1x8x128xf32, #tpu.memory_space<vmem>>, %arg5: memref<1x16x128xf32, #tpu.memory_space<vmem>>, %arg6: memref<1x16x128xf32, #tpu.memory_space<vmem>>, %arg7: memref<1x128x128xf32, #tpu.memory_space<vmem>>, %arg8: memref<1x128x128xbf16, #tpu.memory_space<vmem>>, %arg9: memref<1x128x128xbf16, #tpu.memory_space<vmem>>, %arg10: memref<128x128xf32, #tpu.memory_space<vmem>>, %arg11: memref<128x128xf32, #tpu.memory_space<vmem>>, %arg12: memref<128x128xf32, #tpu.memory_space<vmem>>) attributes {dimension_semantics = [#tpu.dimension_semantics<parallel>, #tpu.dimension_semantics<parallel>, #tpu.dimension_semantics<arbitrary>], iteration_bounds = array<i64: 2, 1, 1>, scalar_prefetch = 0 : i64, scratch_operands = 3 : i64, tpu.core_type = #tpu.core_type<tc>, window_params = [{transform_indices = @transform_0, window_bounds = array<i64: 1, 16, 8>}, {transform_indices = @transform_1, window_bounds = array<i64: 1, 8, 128>}, {transform_indices = @transform_2, window_bounds = array<i64: 1, 16, 128>}, {transform_indices = @transform_3, window_bounds = array<i64: 1, 16, 128>}, {transform_indices = @transform_4, window_bounds = array<i64: 1, 128, 128>}, {transform_indices = @transform_5, window_bounds = array<i64: 1, 128, 128>}, {transform_indices = @transform_6, window_bounds = array<i64: 1, 128, 128>}]} {
    %c0_i32 = arith.constant 0 : i32
    %0 = arith.cmpi eq, %arg2, %c0_i32 : i32
    %1 = arith.extui %0 : i1 to i32
    %c0_i32_0 = arith.constant 0 : i32
    %2 = arith.cmpi ne, %1, %c0_i32_0 : i32
    scf.if %2 {
      %cst_35 = arith.constant 0.000000e+00 : f32
      %55 = vector.broadcast %cst_35 : f32 to vector<128x128xf32>
      %c0_36 = arith.constant 0 : index
      %c0_37 = arith.constant 0 : index
      %c0_38 = arith.constant 0 : index
      %56 = vector.load %arg7[%c0_36, %c0_37, %c0_38] : memref<1x128x128xf32, #tpu.memory_space<vmem>>, vector<1x128x128xf32>
      %57 = vector.shape_cast %56 : vector<1x128x128xf32> to vector<128x128xf32>
      %58 = vector.shape_cast %55 : vector<128x128xf32> to vector<1x128x128xf32>
      tpu.vector_store %arg7[%c0_36, %c0_37, %c0_38], %58 {strides = array<i32>} : memref<1x128x128xf32, #tpu.memory_space<vmem>>, vector<1x128x128xf32>,
      %cst_39 = arith.constant 0.000000e+00 : f32
      %59 = vector.broadcast %cst_39 : f32 to vector<128x128xf32>
      %c0_40 = arith.constant 0 : index
      %c0_41 = arith.constant 0 : index
      %60 = vector.load %arg10[%c0_40, %c0_41] : memref<128x128xf32, #tpu.memory_space<vmem>>, vector<128x128xf32>
      tpu.vector_store %arg10[%c0_40, %c0_41], %59 {strides = array<i32>} : memref<128x128xf32, #tpu.memory_space<vmem>>, vector<128x128xf32>,
      %cst_42 = arith.constant 0.000000e+00 : f32
      %61 = vector.broadcast %cst_42 : f32 to vector<128x128xf32>
      %c0_43 = arith.constant 0 : index
      %c0_44 = arith.constant 0 : index
      %62 = vector.load %arg11[%c0_43, %c0_44] : memref<128x128xf32, #tpu.memory_space<vmem>>, vector<128x128xf32>
      tpu.vector_store %arg11[%c0_43, %c0_44], %61 {strides = array<i32>} : memref<128x128xf32, #tpu.memory_space<vmem>>, vector<128x128xf32>,
      %cst_45 = arith.constant 0.000000e+00 : f32
      %63 = vector.broadcast %cst_45 : f32 to vector<128x128xf32>
      %c0_46 = arith.constant 0 : index
      %c0_47 = arith.constant 0 : index
      %64 = vector.load %arg12[%c0_46, %c0_47] : memref<128x128xf32, #tpu.memory_space<vmem>>, vector<128x128xf32>
      tpu.vector_store %arg12[%c0_46, %c0_47], %63 {strides = array<i32>} : memref<128x128xf32, #tpu.memory_space<vmem>>, vector<128x128xf32>,
    } else {
    }
    %c0 = arith.constant 0 : index
    %c0_1 = arith.constant 0 : index
    %c0_2 = arith.constant 0 : index
    %3 = vector.load %arg3[%c0, %c0_1, %c0_2] : memref<1x16x8xf32, #tpu.memory_space<vmem>>, vector<1x16x8xf32>
    %4 = vector.shape_cast %3 : vector<1x16x8xf32> to vector<16x8xf32>
    %c0_3 = arith.constant 0 : index
    %c0_4 = arith.constant 0 : index
    %c0_5 = arith.constant 0 : index
    %5 = vector.load %arg4[%c0_3, %c0_4, %c0_5] : memref<1x8x128xf32, #tpu.memory_space<vmem>>, vector<1x8x128xf32>
    %6 = vector.shape_cast %5 : vector<1x8x128xf32> to vector<8x128xf32>
    %7 = vector.extract_strided_slice %4 {offsets = [0, 0], sizes = [16, 1], strides = [1, 1]} : vector<16x8xf32> to vector<16x1xf32>
    %8 = vector.extract_strided_slice %6 {offsets = [0, 0], sizes = [1, 128], strides = [1, 1]} : vector<8x128xf32> to vector<1x128xf32>
    %9 = vector.broadcast %7 : vector<16x1xf32> to vector<16x128xf32>
    %10 = vector.broadcast %8 : vector<1x128xf32> to vector<16x128xf32>
    %11 = arith.mulf %9, %10 : vector<16x128xf32>
    %12 = vector.extract_strided_slice %4 {offsets = [0, 1], sizes = [16, 1], strides = [1, 1]} : vector<16x8xf32> to vector<16x1xf32>
    %13 = vector.extract_strided_slice %6 {offsets = [1, 0], sizes = [1, 128], strides = [1, 1]} : vector<8x128xf32> to vector<1x128xf32>
    %14 = vector.broadcast %12 : vector<16x1xf32> to vector<16x128xf32>
    %15 = vector.broadcast %13 : vector<1x128xf32> to vector<16x128xf32>
    %16 = arith.mulf %14, %15 : vector<16x128xf32>
    %17 = arith.addf %11, %16 : vector<16x128xf32>
    %18 = vector.extract_strided_slice %4 {offsets = [0, 2], sizes = [16, 1], strides = [1, 1]} : vector<16x8xf32> to vector<16x1xf32>
    %19 = vector.extract_strided_slice %6 {offsets = [2, 0], sizes = [1, 128], strides = [1, 1]} : vector<8x128xf32> to vector<1x128xf32>
    %20 = vector.broadcast %18 : vector<16x1xf32> to vector<16x128xf32>
    %21 = vector.broadcast %19 : vector<1x128xf32> to vector<16x128xf32>
    %22 = arith.mulf %20, %21 : vector<16x128xf32>
    %23 = arith.addf %17, %22 : vector<16x128xf32>
    %24 = math.cos %23 : vector<16x128xf32>
    %25 = math.sin %23 : vector<16x128xf32>
    %c0_6 = arith.constant 0 : index
    %c0_7 = arith.constant 0 : index
    %c0_8 = arith.constant 0 : index
    %26 = vector.load %arg5[%c0_6, %c0_7, %c0_8] : memref<1x16x128xf32, #tpu.memory_space<vmem>>, vector<1x16x128xf32>
    %27 = vector.shape_cast %26 : vector<1x16x128xf32> to vector<16x128xf32>
    %c0_9 = arith.constant 0 : index
    %c0_10 = arith.constant 0 : index
    %c0_11 = arith.constant 0 : index
    %28 = vector.load %arg7[%c0_9, %c0_10, %c0_11] : memref<1x128x128xf32, #tpu.memory_space<vmem>>, vector<1x128x128xf32>
    %29 = vector.shape_cast %28 : vector<1x128x128xf32> to vector<128x128xf32>
    %cst = arith.constant dense<0.000000e+00> : vector<128x128xf32>
    %30 = tpu.matmul %24, %27, %cst {dimension_numbers = #tpu.dot_dimension_numbers<[0], [0], [1], [1], [0, 1, 1, 1], [], []>} : vector<16x128xf32>, vector<16x128xf32>, vector<128x128xf32> -> vector<128x128xf32>
    %31 = arith.addf %29, %30 : vector<128x128xf32>
    %c0_12 = arith.constant 0 : index
    %c0_13 = arith.constant 0 : index
    %c0_14 = arith.constant 0 : index
    %32 = vector.load %arg7[%c0_12, %c0_13, %c0_14] : memref<1x128x128xf32, #tpu.memory_space<vmem>>, vector<1x128x128xf32>
    %33 = vector.shape_cast %32 : vector<1x128x128xf32> to vector<128x128xf32>
    %34 = vector.shape_cast %31 : vector<128x128xf32> to vector<1x128x128xf32>
    tpu.vector_store %arg7[%c0_12, %c0_13, %c0_14], %34 {strides = array<i32>} : memref<1x128x128xf32, #tpu.memory_space<vmem>>, vector<1x128x128xf32>,
    %c0_15 = arith.constant 0 : index
    %c0_16 = arith.constant 0 : index
    %35 = vector.load %arg10[%c0_15, %c0_16] : memref<128x128xf32, #tpu.memory_space<vmem>>, vector<128x128xf32>
    %cst_17 = arith.constant dense<0.000000e+00> : vector<128x128xf32>
    %36 = tpu.matmul %25, %27, %cst_17 {dimension_numbers = #tpu.dot_dimension_numbers<[0], [0], [1], [1], [0, 1, 1, 1], [], []>} : vector<16x128xf32>, vector<16x128xf32>, vector<128x128xf32> -> vector<128x128xf32>
    %37 = arith.addf %35, %36 : vector<128x128xf32>
    %c0_18 = arith.constant 0 : index
    %c0_19 = arith.constant 0 : index
    %38 = vector.load %arg10[%c0_18, %c0_19] : memref<128x128xf32, #tpu.memory_space<vmem>>, vector<128x128xf32>
    tpu.vector_store %arg10[%c0_18, %c0_19], %37 {strides = array<i32>} : memref<128x128xf32, #tpu.memory_space<vmem>>, vector<128x128xf32>,
    %c0_20 = arith.constant 0 : index
    %c0_21 = arith.constant 0 : index
    %c0_22 = arith.constant 0 : index
    %39 = vector.load %arg6[%c0_20, %c0_21, %c0_22] : memref<1x16x128xf32, #tpu.memory_space<vmem>>, vector<1x16x128xf32>
    %40 = vector.shape_cast %39 : vector<1x16x128xf32> to vector<16x128xf32>
    %41 = arith.truncf %40 : vector<16x128xf32> to vector<16x128xbf16>
    %c0_23 = arith.constant 0 : index
    %c0_24 = arith.constant 0 : index
    %42 = vector.load %arg11[%c0_23, %c0_24] : memref<128x128xf32, #tpu.memory_space<vmem>>, vector<128x128xf32>
    %43 = arith.truncf %24 : vector<16x128xf32> to vector<16x128xbf16>
    %cst_25 = arith.constant dense<0.000000e+00> : vector<128x128xf32>
    %44 = tpu.matmul %43, %41, %cst_25 {dimension_numbers = #tpu.dot_dimension_numbers<[0], [0], [1], [1], [0, 1, 1, 1], [], []>} : vector<16x128xbf16>, vector<16x128xbf16>, vector<128x128xf32> -> vector<128x128xf32>
    %45 = arith.addf %42, %44 : vector<128x128xf32>
    %c0_26 = arith.constant 0 : index
    %c0_27 = arith.constant 0 : index
    %46 = vector.load %arg11[%c0_26, %c0_27] : memref<128x128xf32, #tpu.memory_space<vmem>>, vector<128x128xf32>
    tpu.vector_store %arg11[%c0_26, %c0_27], %45 {strides = array<i32>} : memref<128x128xf32, #tpu.memory_space<vmem>>, vector<128x128xf32>,
    %c0_28 = arith.constant 0 : index
    %c0_29 = arith.constant 0 : index
    %47 = vector.load %arg12[%c0_28, %c0_29] : memref<128x128xf32, #tpu.memory_space<vmem>>, vector<128x128xf32>
    %48 = arith.truncf %25 : vector<16x128xf32> to vector<16x128xbf16>
    %cst_30 = arith.constant dense<0.000000e+00> : vector<128x128xf32>
    %49 = tpu.matmul %48, %41, %cst_30 {dimension_numbers = #tpu.dot_dimension_numbers<[0], [0], [1], [1], [0, 1, 1, 1], [], []>} : vector<16x128xbf16>, vector<16x128xbf16>, vector<128x128xf32> -> vector<128x128xf32>
    %50 = arith.addf %47, %49 : vector<128x128xf32>
    %c0_31 = arith.constant 0 : index
    %c0_32 = arith.constant 0 : index
    %51 = vector.load %arg12[%c0_31, %c0_32] : memref<128x128xf32, #tpu.memory_space<vmem>>, vector<128x128xf32>
    tpu.vector_store %arg12[%c0_31, %c0_32], %50 {strides = array<i32>} : memref<128x128xf32, #tpu.memory_space<vmem>>, vector<128x128xf32>,
    %c0_i32_33 = arith.constant 0 : i32
    %52 = arith.cmpi eq, %arg2, %c0_i32_33 : i32
    %53 = arith.extui %52 : i1 to i32
    %c0_i32_34 = arith.constant 0 : i32
    %54 = arith.cmpi ne, %53, %c0_i32_34 : i32
    scf.if %54 {
      %c0_35 = arith.constant 0 : index
      %c0_36 = arith.constant 0 : index
      %c0_37 = arith.constant 0 : index
      %55 = vector.load %arg7[%c0_35, %c0_36, %c0_37] : memref<1x128x128xf32, #tpu.memory_space<vmem>>, vector<1x128x128xf32>
      %56 = vector.shape_cast %55 : vector<1x128x128xf32> to vector<128x128xf32>
      %c0_38 = arith.constant 0 : index
      %c0_39 = arith.constant 0 : index
      %57 = vector.load %arg10[%c0_38, %c0_39] : memref<128x128xf32, #tpu.memory_space<vmem>>, vector<128x128xf32>
      %58 = arith.mulf %56, %56 : vector<128x128xf32>
      %59 = arith.mulf %57, %57 : vector<128x128xf32>
      %60 = arith.addf %58, %59 : vector<128x128xf32>
      %61 = math.sqrt %60 : vector<128x128xf32>
      %c0_40 = arith.constant 0 : index
      %c0_41 = arith.constant 0 : index
      %c0_42 = arith.constant 0 : index
      %62 = vector.load %arg7[%c0_40, %c0_41, %c0_42] : memref<1x128x128xf32, #tpu.memory_space<vmem>>, vector<1x128x128xf32>
      %63 = vector.shape_cast %62 : vector<1x128x128xf32> to vector<128x128xf32>
      %64 = vector.shape_cast %61 : vector<128x128xf32> to vector<1x128x128xf32>
      tpu.vector_store %arg7[%c0_40, %c0_41, %c0_42], %64 {strides = array<i32>} : memref<1x128x128xf32, #tpu.memory_space<vmem>>, vector<1x128x128xf32>,
      %c0_43 = arith.constant 0 : index
      %c0_44 = arith.constant 0 : index
      %65 = vector.load %arg11[%c0_43, %c0_44] : memref<128x128xf32, #tpu.memory_space<vmem>>, vector<128x128xf32>
      %66 = arith.truncf %65 : vector<128x128xf32> to vector<128x128xbf16>
      %c0_45 = arith.constant 0 : index
      %c0_46 = arith.constant 0 : index
      %c0_47 = arith.constant 0 : index
      %67 = vector.load %arg8[%c0_45, %c0_46, %c0_47] : memref<1x128x128xbf16, #tpu.memory_space<vmem>>, vector<1x128x128xbf16>
      %68 = vector.shape_cast %67 : vector<1x128x128xbf16> to vector<128x128xbf16>
      %69 = vector.shape_cast %66 : vector<128x128xbf16> to vector<1x128x128xbf16>
      tpu.vector_store %arg8[%c0_45, %c0_46, %c0_47], %69 {strides = array<i32>} : memref<1x128x128xbf16, #tpu.memory_space<vmem>>, vector<1x128x128xbf16>,
      %c0_48 = arith.constant 0 : index
      %c0_49 = arith.constant 0 : index
      %70 = vector.load %arg12[%c0_48, %c0_49] : memref<128x128xf32, #tpu.memory_space<vmem>>, vector<128x128xf32>
      %71 = arith.truncf %70 : vector<128x128xf32> to vector<128x128xbf16>
      %c0_50 = arith.constant 0 : index
      %c0_51 = arith.constant 0 : index
      %c0_52 = arith.constant 0 : index
      %72 = vector.load %arg9[%c0_50, %c0_51, %c0_52] : memref<1x128x128xbf16, #tpu.memory_space<vmem>>, vector<1x128x128xbf16>
      %73 = vector.shape_cast %72 : vector<1x128x128xbf16> to vector<128x128xbf16>
      %74 = vector.shape_cast %71 : vector<128x128xbf16> to vector<1x128x128xbf16>
      tpu.vector_store %arg9[%c0_50, %c0_51, %c0_52], %74 {strides = array<i32>} : memref<1x128x128xbf16, #tpu.memory_space<vmem>>, vector<1x128x128xbf16>,
    } else {
    }
    return
  }
  func.func @transform_0(%arg0: i32, %arg1: i32, %arg2: i32) -> (i32, i32, i32) {
    %c0_i32 = arith.constant 0 : i32
    %c0_i32_0 = arith.constant 0 : i32
    return %arg0, %arg2, %c0_i32 : i32, i32, i32
  }
  func.func @transform_1(%arg0: i32, %arg1: i32, %arg2: i32) -> (i32, i32, i32) {
    %c0_i32 = arith.constant 0 : i32
    %c0_i32_0 = arith.constant 0 : i32
    return %arg0, %c0_i32, %arg1 : i32, i32, i32
  }
  func.func @transform_2(%arg0: i32, %arg1: i32, %arg2: i32) -> (i32, i32, i32) {
    %c0_i32 = arith.constant 0 : i32
    %c0_i32_0 = arith.constant 0 : i32
    return %arg0, %arg2, %c0_i32 : i32, i32, i32
  }
  func.func @transform_3(%arg0: i32, %arg1: i32, %arg2: i32) -> (i32, i32, i32) {
    %c0_i32 = arith.constant 0 : i32
    %c0_i32_0 = arith.constant 0 : i32
    return %arg0, %arg2, %c0_i32 : i32, i32, i32
  }
  func.func @transform_4(%arg0: i32, %arg1: i32, %arg2: i32) -> (i32, i32, i32) {
    %c0_i32 = arith.constant 0 : i32
    %c0_i32_0 = arith.constant 0 : i32
    return %arg0, %arg1, %c0_i32 : i32, i32, i32
  }
  func.func @transform_5(%arg0: i32, %arg1: i32, %arg2: i32) -> (i32, i32, i32) {
    %c0_i32 = arith.constant 0 : i32
    %c0_i32_0 = arith.constant 0 : i32
    return %arg0, %arg1, %c0_i32 : i32, i32, i32
  }
  func.func @transform_6(%arg0: i32, %arg1: i32, %arg2: i32) -> (i32, i32, i32) {
    %c0_i32 = arith.constant 0 : i32
    %c0_i32_0 = arith.constant 0 : i32
    return %arg0, %arg1, %c0_i32 : i32, i32, i32
  }
}

</mosaic_0001>

<llo_original>
// kernel: tpu_custom_call.1
$region0: #{tpu_custom_call.1}
  #allocation0 [shape = 'u32[]', space=smem, size = 0x4, offset = 0x4, fixed_abs, tag = 'smem constant byte address 0x4 - core index']
  #allocation1 [shape = 'u32[144,128]{1,0:T(1,128)}', space=vmem, size = 0x12000, scoped, tag = 'internal scratch']
  #allocation2 [shape = 'f32[128,128]{1,0:T(8,128)}', space=vmem, size = 0x10000, scoped, tag = 'scratch operand']
  #allocation3 [shape = 'f32[128,128]{1,0:T(8,128)}', space=vmem, size = 0x10000, scoped, tag = 'scratch operand']
  #allocation4 [shape = 'f32[128,128]{1,0:T(8,128)}', space=vmem, size = 0x10000, scoped, tag = 'scratch operand']
  %s0 = inlined_call_operand.vmem [shape: f32[2,16,8], index: 0, kind: input, shape index: {}]
  %s1 = inlined_call_operand.vmem [shape: f32[2,8,128], index: 1, kind: input, shape index: {}]
  %s2 = inlined_call_operand.vmem [shape: f32[2,16,128], index: 2, kind: input, shape index: {}]
  %s3 = inlined_call_operand.hbm [shape: f32[2,16,128], index: 3, kind: input, shape index: {}]
  %s4 = inlined_call_operand.hbm [shape: f32[2,128,128], index: 4, kind: output, shape index: {0}]
  %s5 = inlined_call_operand.hbm [shape: bf16[2,128,128], index: 5, kind: output, shape index: {1}]
  %s6 = inlined_call_operand.hbm [shape: bf16[2,128,128], index: 6, kind: output, shape index: {2}]
  %7 = xla_tuple %s4, %s5, %s6
  %s8 = sld [smem:[#allocation0]]
  $region77: #{tpu_custom_call.1} parent=0
    _
  %s10 = ssub.s32 1, %s8
  %s11 = scalar_select 0, %s10, %s8
  $region1: #{tpu_custom_call.1} parent=0
    #allocation5 [shape = 'u8[16384]{0}', space=vmem, size = 0x4000, scoped, tag = 'input window, operand 3']
    #allocation6 [shape = 's32[2]{0}', space=sflag, size = 0x8, scoped, tag = 'scoped memory for tpu_custom_call.1']
    #allocation7 [shape = 's32[2]{0}', space=sflag, size = 0x8, scoped, tag = 'scoped memory for tpu_custom_call.1']
    #allocation8 [shape = 'u8[131072]{0}', space=vmem, size = 0x20000, scoped, tag = 'output window, operand 0']
    #allocation9 [shape = 'u8[65536]{0}', space=vmem, size = 0x10000, scoped, tag = 'output window, operand 1']
    #allocation10 [shape = 's32[2]{0}', space=sflag, size = 0x8, scoped, tag = 'scoped memory for tpu_custom_call.1']
    #allocation11 [shape = 'u8[65536]{0}', space=vmem, size = 0x10000, scoped, tag = 'output window, operand 2']
    %12 = vsyncpa [#allocation6], 0
    %s13 = scalar_lea.sflag [#allocation6], 1
    %14 = vsyncpa %s13, 0
    %15 = vsyncpa [#allocation7], 0
    %s16 = scalar_lea.sflag [#allocation7], 1
    %17 = vsyncpa %s16, 0
    %18 = vsyncpa [#allocation10], 0
    %s19 = scalar_lea.sflag [#allocation10], 1
    %20 = vsyncpa %s19, 0
    loop: start=0, step=1, limit=4
    $region2: #{tpu_custom_call.1} parent=1 // loop_pre_header
      _
    $region3: #{tpu_custom_call.1} parent=1 // loop_header
      %s22 = sphi 0, %s26
      %p23 = scmp.ge.s32.totalorder %s22, 4
      %s29 = sphi 0, %s48
      %s30 = sphi 0, %s44
      %s31 = sphi 0, %s40
      %s32 = sphi 0, %s29
      %s33 = sphi 0, %s30
      %s34 = sphi 0, %s31
      %s35 = sphi 0, %s32
      %s36 = sphi 0, %s33
      %s37 = sphi 0, %s34
      %s53 = sphi 0, %s55
      %s56 = sphi 0, %s53
      %s57 = sphi 0, %s56
      %s73 = sphi 0, %s57
      %s81 = sphi 0, %s83
      %s84 = sphi 0, %s81
      %s85 = sphi 0, %s84
      %s101 = sphi 0, %s85
      %s109 = sphi 0, %s111
      %s112 = sphi 0, %s109
      %s113 = sphi 0, %s112
      %s129 = sphi 0, %s113
      %s137 = sphi 0, %s139
      %s140 = sphi 0, %s137
      %s141 = sphi 0, %s140
      %s157 = sphi 0, %s141
      %s165 = sphi 0, %s167
      %s168 = sphi 0, %s165
      %s169 = sphi 0, %s168
      %s185 = sphi 0, %s169
      %s193 = sphi 0, %s195
      %s196 = sphi 0, %s193
      %s197 = sphi 0, %s196
      %s213 = sphi 0, %s197
      %s221 = sphi 0, %s223
      %s224 = sphi 0, %s221
      %s225 = sphi 0, %s224
      %s241 = sphi 0, %s225
    $region4: #{tpu_custom_call.1} parent=1 // loop_header_branch
      %25 = sbr.rel (%p23) target = $region8
    $region5: #{tpu_custom_call.1} parent=1 // loop_body
      %s27 = ssub.s32 %s22, 1
      %s28 = ssub.s32 %s22, 2
      %s38 = sadd.s32 1, %s31
      %p39 = scmp.ge.s32.totalorder %s38, 1
      %s40 = scalar_select %p39, 0, %s38
      %s41 = sadd.s32 1, %s30
      %s42 = scalar_select %p39, %s41, %s30
      %p43 = scmp.ge.s32.totalorder %s42, 1
      %s44 = scalar_select %p43, 0, %s42
      %s45 = sadd.s32 1, %s29
      %s46 = scalar_select %p43, %s45, %s29
      %p47 = scmp.ge.s32.totalorder %s46, 2
      %s48 = scalar_select %p47, 0, %s46
      %s49 = ssub.s32 %s29, %s48
      %s50 = ssub.s32 %s31, %s40
      %s51 = sor.u32 %s49, %s50
      %p52 = scmp.eq.s32.totalorder %s51, 0
      %s54 = sadd.s32 %s53, 1
      %s55 = scalar_select %p52, %s53, %s54
      %p58 = pneg %p52
      %p59 = scmp.eq.s32.totalorder %s22, 1
      %p60 = por %p58, %p59
      %p61 = scmp.ne.s32.totalorder %s53, %s56
      %p62 = scmp.eq.s32.totalorder %s22, 0
      %p63 = por %p61, %p62
      %p64 = scmp.ne.s32.totalorder %s53, %s56
      %p65 = scmp.eq.s32.totalorder %s27, 1
      %p66 = por %p64, %p65
      %p67 = scmp.ne.s32.totalorder %s56, %s57
      %p68 = scmp.eq.s32.totalorder %s27, 0
      %p69 = por %p67, %p68
      %p70 = scmp.ne.s32.totalorder %s56, %s57
      %p71 = scmp.eq.s32.totalorder %s28, 1
      %p72 = por %p70, %p71
      %p74 = scmp.ne.s32.totalorder %s57, %s73
      %p75 = scmp.eq.s32.totalorder %s28, 0
      %p76 = por %p74, %p75
      %s77 = ssub.s32 %s29, %s48
      %s78 = ssub.s32 %s30, %s44
      %s79 = sor.u32 %s77, %s78
      %p80 = scmp.eq.s32.totalorder %s79, 0
      %s82 = sadd.s32 %s81, 1
      %s83 = scalar_select %p80, %s81, %s82
      %p86 = pneg %p80
      %p87 = scmp.eq.s32.totalorder %s22, 1
      %p88 = por %p86, %p87
      %p89 = scmp.ne.s32.totalorder %s81, %s84
      %p90 = scmp.eq.s32.totalorder %s22, 0
      %p91 = por %p89, %p90
      %p92 = scmp.ne.s32.totalorder %s81, %s84
      %p93 = scmp.eq.s32.totalorder %s27, 1
      %p94 = por %p92, %p93
      %p95 = scmp.ne.s32.totalorder %s84, %s85
      %p96 = scmp.eq.s32.totalorder %s27, 0
      %p97 = por %p95, %p96
      %p98 = scmp.ne.s32.totalorder %s84, %s85
      %p99 = scmp.eq.s32.totalorder %s28, 1
      %p100 = por %p98, %p99
      %p102 = scmp.ne.s32.totalorder %s85, %s101
      %p103 = scmp.eq.s32.totalorder %s28, 0
      %p104 = por %p102, %p103
      %s105 = ssub.s32 %s29, %s48
      %s106 = ssub.s32 %s31, %s40
      %s107 = sor.u32 %s105, %s106
      %p108 = scmp.eq.s32.totalorder %s107, 0
      %s110 = sadd.s32 %s109, 1
      %s111 = scalar_select %p108, %s109, %s110
      %p114 = pneg %p108
      %p115 = scmp.eq.s32.totalorder %s22, 1
      %p116 = por %p114, %p115
      %p117 = scmp.ne.s32.totalorder %s109, %s112
      %p118 = scmp.eq.s32.totalorder %s22, 0
      %p119 = por %p117, %p118
      %p120 = scmp.ne.s32.totalorder %s109, %s112
      %p121 = scmp.eq.s32.totalorder %s27, 1
      %p122 = por %p120, %p121
      %p123 = scmp.ne.s32.totalorder %s112, %s113
      %p124 = scmp.eq.s32.totalorder %s27, 0
      %p125 = por %p123, %p124
      %p126 = scmp.ne.s32.totalorder %s112, %s113
      %p127 = scmp.eq.s32.totalorder %s28, 1
      %p128 = por %p126, %p127
      %p130 = scmp.ne.s32.totalorder %s113, %s129
      %p131 = scmp.eq.s32.totalorder %s28, 0
      %p132 = por %p130, %p131
      %s133 = ssub.s32 %s29, %s48
      %s134 = ssub.s32 %s31, %s40
      %s135 = sor.u32 %s133, %s134
      %p136 = scmp.eq.s32.totalorder %s135, 0
      %s138 = sadd.s32 %s137, 1
      %s139 = scalar_select %p136, %s137, %s138
      %p142 = pneg %p136
      %p143 = scmp.eq.s32.totalorder %s22, 1
      %p144 = por %p142, %p143
      %p145 = scmp.ne.s32.totalorder %s137, %s140
      %p146 = scmp.eq.s32.totalorder %s22, 0
      %p147 = por %p145, %p146
      %p148 = scmp.ne.s32.totalorder %s137, %s140
      %p149 = scmp.eq.s32.totalorder %s27, 1
      %p150 = por %p148, %p149
      %p151 = scmp.ne.s32.totalorder %s140, %s141
      %p152 = scmp.eq.s32.totalorder %s27, 0
      %p153 = por %p151, %p152
      %p154 = scmp.ne.s32.totalorder %s140, %s141
      %p155 = scmp.eq.s32.totalorder %s28, 1
      %p156 = por %p154, %p155
      %p158 = scmp.ne.s32.totalorder %s141, %s157
      %p159 = scmp.eq.s32.totalorder %s28, 0
      %p160 = por %p158, %p159
      %s161 = ssub.s32 %s29, %s48
      %s162 = ssub.s32 %s30, %s44
      %s163 = sor.u32 %s161, %s162
      %p164 = scmp.eq.s32.totalorder %s163, 0
      %s166 = sadd.s32 %s165, 1
      %s167 = scalar_select %p164, %s165, %s166
      %p170 = pneg %p164
      %p171 = scmp.eq.s32.totalorder %s22, 1
      %p172 = por %p170, %p171
      %p173 = scmp.ne.s32.totalorder %s165, %s168
      %p174 = scmp.eq.s32.totalorder %s22, 0
      %p175 = por %p173, %p174
      %p176 = scmp.ne.s32.totalorder %s165, %s168
      %p177 = scmp.eq.s32.totalorder %s27, 1
      %p178 = por %p176, %p177
      %p179 = scmp.ne.s32.totalorder %s168, %s169
      %p180 = scmp.eq.s32.totalorder %s27, 0
      %p181 = por %p179, %p180
      %p182 = scmp.ne.s32.totalorder %s168, %s169
      %p183 = scmp.eq.s32.totalorder %s28, 1
      %p184 = por %p182, %p183
      %p186 = scmp.ne.s32.totalorder %s169, %s185
      %p187 = scmp.eq.s32.totalorder %s28, 0
      %p188 = por %p186, %p187
      %s189 = ssub.s32 %s29, %s48
      %s190 = ssub.s32 %s30, %s44
      %s191 = sor.u32 %s189, %s190
      %p192 = scmp.eq.s32.totalorder %s191, 0
      %s194 = sadd.s32 %s193, 1
      %s195 = scalar_select %p192, %s193, %s194
      %p198 = pneg %p192
      %p199 = scmp.eq.s32.totalorder %s22, 1
      %p200 = por %p198, %p199
      %p201 = scmp.ne.s32.totalorder %s193, %s196
      %p202 = scmp.eq.s32.totalorder %s22, 0
      %p203 = por %p201, %p202
      %p204 = scmp.ne.s32.totalorder %s193, %s196
      %p205 = scmp.eq.s32.totalorder %s27, 1
      %p206 = por %p204, %p205
      %p207 = scmp.ne.s32.totalorder %s196, %s197
      %p208 = scmp.eq.s32.totalorder %s27, 0
      %p209 = por %p207, %p208
      %p210 = scmp.ne.s32.totalorder %s196, %s197
      %p211 = scmp.eq.s32.totalorder %s28, 1
      %p212 = por %p210, %p211
      %p214 = scmp.ne.s32.totalorder %s197, %s213
      %p215 = scmp.eq.s32.totalorder %s28, 0
      %p216 = por %p214, %p215
      %s217 = ssub.s32 %s29, %s48
      %s218 = ssub.s32 %s30, %s44
      %s219 = sor.u32 %s217, %s218
      %p220 = scmp.eq.s32.totalorder %s219, 0
      %s222 = sadd.s32 %s221, 1
      %s223 = scalar_select %p220, %s221, %s222
      %p226 = pneg %p220
      %p227 = scmp.eq.s32.totalorder %s22, 1
      %p228 = por %p226, %p227
      %p229 = scmp.ne.s32.totalorder %s221, %s224
      %p230 = scmp.eq.s32.totalorder %s22, 0
      %p231 = por %p229, %p230
      %p232 = scmp.ne.s32.totalorder %s221, %s224
      %p233 = scmp.eq.s32.totalorder %s27, 1
      %p234 = por %p232, %p233
      %p235 = scmp.ne.s32.totalorder %s224, %s225
      %p236 = scmp.eq.s32.totalorder %s27, 0
      %p237 = por %p235, %p236
      %p238 = scmp.ne.s32.totalorder %s224, %s225
      %p239 = scmp.eq.s32.totalorder %s28, 1
      %p240 = por %p238, %p239
      %p242 = scmp.ne.s32.totalorder %s225, %s241
      %p243 = scmp.eq.s32.totalorder %s28, 0
      %p244 = por %p242, %p243
      %p245 = scmp.le.s32.totalorder 1, %s22
      %p246 = scmp.lt.s32.totalorder %s22, 3
      %p247 = pnand %p245, %p246
      %p248 = pneg %p247
      // Predicated region
      $region9: #{tpu_custom_call.1} parent=5 // pred_check
        _
      $region10: #{tpu_custom_call.1} parent=5 // pred_check_branch
        %250 = sbr.rel (%p247) target = $region12
      $region11: #{tpu_custom_call.1} parent=5 // pred_region
        %s251 = ssub.s32 %s22, 1
      $region12: #{tpu_custom_call.1} parent=5 // pred_fallthru
        _
      %p252 = scmp.lt.s32.totalorder %s22, 2
      // Predicated region
      $region13: #{tpu_custom_call.1} parent=5 // pred_check
        %p253 = pneg %p252
      $region14: #{tpu_custom_call.1} parent=5 // pred_check_branch
        %255 = sbr.rel (%p253) target = $region16
      $region15: #{tpu_custom_call.1} parent=5 // pred_region
        // Predicated region
        $region17: #{tpu_custom_call.1} parent=15 // pred_check
          %p256 = pneg %p63
        $region18: #{tpu_custom_call.1} parent=15 // pred_check_branch
          %258 = sbr.rel (%p256) target = $region20
        $region19: #{tpu_custom_call.1} parent=15 // pred_region
          %s259 = smul.u32 2, %s31
          %p260 = scmp.lt.s32.totalorder %s29, 1
          %s261 = scalar_select %p260, %s29, 1
          %p262 = scmp.lt.s32.totalorder %s259, 1
          %s263 = scalar_select %p262, %s259, 1
          %s264 = smul.addr %s261, 2
          %s265 = sadd.s32 %s263, %s264
          %s266 = smul.addr %s265, 8
          %s267 = scalar_lea.vmem %s0, %s266
          %s268 = smul.u32 2, %s31
        $region20: #{tpu_custom_call.1} parent=15 // pred_fallthru
          _
        // Predicated region
        $region21: #{tpu_custom_call.1} parent=15 // pred_check
          %p269 = pneg %p91
        $region22: #{tpu_custom_call.1} parent=15 // pred_check_branch
          %271 = sbr.rel (%p269) target = $region24
        $region23: #{tpu_custom_call.1} parent=15 // pred_region
          %p272 = scmp.lt.s32.totalorder %s29, 1
          %s273 = scalar_select %p272, %s29, 1
          %p274 = scmp.lt.s32.totalorder %s30, 0
          %s275 = scalar_select %p274, %s30, 0
          %s276 = sadd.s32 %s275, %s273
          %s277 = smul.addr %s276, 8
          %s278 = scalar_lea.vmem %s1, %s277
        $region24: #{tpu_custom_call.1} parent=15 // pred_fallthru
          _
        // Predicated region
        $region25: #{tpu_custom_call.1} parent=15 // pred_check
          %p279 = pneg %p119
        $region26: #{tpu_custom_call.1} parent=15 // pred_check_branch
          %281 = sbr.rel (%p279) target = $region28
        $region27: #{tpu_custom_call.1} parent=15 // pred_region
          %s282 = smul.u32 2, %s31
          %p283 = scmp.lt.s32.totalorder %s29, 1
          %s284 = scalar_select %p283, %s29, 1
          %p285 = scmp.lt.s32.totalorder %s282, 1
          %s286 = scalar_select %p285, %s282, 1
          %s287 = smul.addr %s284, 2
          %s288 = sadd.s32 %s286, %s287
          %s289 = smul.addr %s288, 8
          %s290 = scalar_lea.vmem %s2, %s289
          %s291 = smul.u32 2, %s31
        $region28: #{tpu_custom_call.1} parent=15 // pred_fallthru
          _
        // Predicated region
        $region29: #{tpu_custom_call.1} parent=15 // pred_check
          %p292 = pneg %p147
        $region30: #{tpu_custom_call.1} parent=15 // pred_check_branch
          %294 = sbr.rel (%p292) target = $region32
        $region31: #{tpu_custom_call.1} parent=15 // pred_region
          %s295 = sand.u32 %s137, 1
          %s296 = scalar_lea.sflag [#allocation6], %s295
          %s297 = sand.u32 %s137, 1
          %s298 = smul.addr %s297, 16
          %s299 = scalar_lea.vmem [#allocation5], %s298
          %s300 = smul.u32 2, %s31
          %s302 = ssub.s32 256, 256
          %303 = vsyncadd %s296, %s302
          %s304 = smul.addr %s29, 2
          %s305 = sadd.s32 %s300, %s304
          %s306 = smul.addr %s305, 128
          %s307 = scalar_lea.hbm %s3, %s306
          %s308 = sshll.u32 %s299, 4
          %s309 = int_to_ptr.vmem [resolvable:$true] %s308
          %314 = dma.hbm_to_vmem [thread:$0]  %s307, 256, %s309, %s296, 128, 128, 8
        $region32: #{tpu_custom_call.1} parent=15 // pred_fallthru
          _
      $region16: #{tpu_custom_call.1} parent=5 // pred_fallthru
        _
      %p315 = scmp.le.s32.totalorder 1, %s22
      %p316 = scmp.lt.s32.totalorder %s22, 3
      %p317 = pnand %p315, %p316
      %p318 = pneg %p317
      // Predicated region
      $region33: #{tpu_custom_call.1} parent=5 // pred_check
        _
      $region34: #{tpu_custom_call.1} parent=5 // pred_check_branch
        %320 = sbr.rel (%p317) target = $region36
      $region35: #{tpu_custom_call.1} parent=5 // pred_region
        %s321 = ssub.s32 %s22, 1
        %s322 = sand.u32 %s140, 1
        %s323 = scalar_lea.sflag [#allocation6], %s322
        %s324 = sand.u32 %s140, 1
        %s325 = smul.addr %s324, 16
        %s326 = scalar_lea.vmem [#allocation5], %s325
        // Predicated region
        $region37: #{tpu_custom_call.1} parent=35 // pred_check
          %p327 = pneg %p153
        $region38: #{tpu_custom_call.1} parent=35 // pred_check_branch
          %329 = sbr.rel (%p327) target = $region40
        $region39: #{tpu_custom_call.1} parent=35 // pred_region
          %330 = dma.done %s323, 256
        $region40: #{tpu_custom_call.1} parent=35 // pred_fallthru
          _
        %s331 = smul.u32 2, %s34
        %p332 = scmp.lt.s32.totalorder %s32, 1
        %s333 = scalar_select %p332, %s32, 1
        %p334 = scmp.lt.s32.totalorder %s331, 1
        %s335 = scalar_select %p334, %s331, 1
        %s336 = smul.addr %s333, 2
        %s337 = sadd.s32 %s335, %s336
        %s338 = smul.addr %s337, 8
        %s339 = scalar_lea.vmem %s0, %s338
        %p340 = pneg %p69
        %p341 = pneg %p66
        %p342 = scmp.lt.s32.totalorder %s32, 1
        %s343 = scalar_select %p342, %s32, 1
        %p344 = scmp.lt.s32.totalorder %s33, 0
        %s345 = scalar_select %p344, %s33, 0
        %s346 = sadd.s32 %s345, %s343
        %s347 = smul.addr %s346, 8
        %s348 = scalar_lea.vmem %s1, %s347
        %p349 = pneg %p97
        %p350 = pneg %p94
        %s351 = smul.u32 2, %s34
        %p352 = scmp.lt.s32.totalorder %s32, 1
        %s353 = scalar_select %p352, %s32, 1
        %p354 = scmp.lt.s32.totalorder %s351, 1
        %s355 = scalar_select %p354, %s351, 1
        %s356 = smul.addr %s353, 2
        %s357 = sadd.s32 %s355, %s356
        %s358 = smul.addr %s357, 8
        %s359 = scalar_lea.vmem %s2, %s358
        %p360 = pneg %p125
        %p361 = pneg %p122
        %s362 = sand.u32 %s140, 1
        %s363 = scalar_lea.sflag [#allocation6], %s362
        %s364 = sand.u32 %s140, 1
        %s365 = smul.addr %s364, 16
        %s366 = scalar_lea.vmem [#allocation5], %s365
        %p367 = pneg %p153
        %p368 = pneg %p150
        %p369 = pneg %p181
        %p370 = pneg %p178
        %s371 = sand.u32 %s168, 1
        %s372 = scalar_lea.sflag [#allocation7], %s371
        %s373 = sand.u32 %s168, 1
        %s374 = smul.addr %s373, 128
        %s375 = scalar_lea.vmem [#allocation8], %s374
        %p376 = pneg %p209
        %p377 = pneg %p206
        %s378 = sand.u32 %s27, 1
        %s379 = scalar_lea.sflag [#allocation10], %s378
        %s380 = sand.u32 %s196, 1
        %s381 = smul.addr %s380, 64
        %s382 = scalar_lea.vmem [#allocation9], %s381
        %p383 = pneg %p237
        %p384 = pneg %p234
        %s385 = sand.u32 %s27, 1
        %s386 = scalar_lea.sflag [#allocation10], %s385
        %s387 = sand.u32 %s224, 1
        %s388 = smul.addr %s387, 64
        %s389 = scalar_lea.vmem [#allocation11], %s388
        %s390 = smul.u32 2, %s34
        %p391 = scmp.lt.s32.totalorder %s32, 1
        %s392 = scalar_select %p391, %s32, 1
        %p393 = scmp.lt.s32.totalorder %s390, 1
        %s394 = scalar_select %p393, %s390, 1
        %s395 = smul.addr %s392, 2
        %s396 = sadd.s32 %s394, %s395
        %s397 = smul.addr %s396, 8
        %s398 = scalar_lea.vmem %s0, %s397
        %s399 = smul.u32 2, %s34
        %p400 = scmp.lt.s32.totalorder %s32, 1
        %s401 = scalar_select %p400, %s32, 1
        %p402 = scmp.lt.s32.totalorder %s33, 0
        %s403 = scalar_select %p402, %s33, 0
        %s404 = sadd.s32 %s403, %s401
        %s405 = smul.addr %s404, 8
        %s406 = scalar_lea.vmem %s1, %s405
        %s407 = smul.u32 2, %s34
        %p408 = scmp.lt.s32.totalorder %s32, 1
        %s409 = scalar_select %p408, %s32, 1
        %p410 = scmp.lt.s32.totalorder %s407, 1
        %s411 = scalar_select %p410, %s407, 1
        %s412 = smul.addr %s409, 2
        %s413 = sadd.s32 %s411, %s412
        %s414 = smul.addr %s413, 8
        %s415 = scalar_lea.vmem %s2, %s414
        %s416 = smul.u32 2, %s34
        %s417 = smul.u32 2, %s34
        %s418 = smul.u32 16, %s33
        %s419 = smul.u32 16, %s33
        %s420 = smul.u32 16, %s33
        %p422 = scmp.eq.s32.totalorder %s34, 0
        // Predicated region
        $region41: #{tpu_custom_call.1} parent=35 // pred_check
          %p423 = pneg %p422
        $region42: #{tpu_custom_call.1} parent=35 // pred_check_branch
          %425 = sbr.rel (%p423) target = $region44
        $region43: #{tpu_custom_call.1} parent=35 // pred_region
          %426 = vst [vmem:[%s375] sm:$0xff] 0.0
          %427 = vst [vmem:[%s375 + $0x8] sm:$0xff] 0.0
          %428 = vst [vmem:[%s375 + $0x10] sm:$0xff] 0.0
          %429 = vst [vmem:[%s375 + $0x18] sm:$0xff] 0.0
          %430 = vst [vmem:[%s375 + $0x20] sm:$0xff] 0.0
          %431 = vst [vmem:[%s375 + $0x28] sm:$0xff] 0.0
          %432 = vst [vmem:[%s375 + $0x30] sm:$0xff] 0.0
          %433 = vst [vmem:[%s375 + $0x38] sm:$0xff] 0.0
          %434 = vst [vmem:[%s375 + $0x40] sm:$0xff] 0.0
          %435 = vst [vmem:[%s375 + $0x48] sm:$0xff] 0.0
          %436 = vst [vmem:[%s375 + $0x50] sm:$0xff] 0.0
          %437 = vst [vmem:[%s375 + $0x58] sm:$0xff] 0.0
          %438 = vst [vmem:[%s375 + $0x60] sm:$0xff] 0.0
          %439 = vst [vmem:[%s375 + $0x68] sm:$0xff] 0.0
          %440 = vst [vmem:[%s375 + $0x70] sm:$0xff] 0.0
          %441 = vst [vmem:[%s375 + $0x78] sm:$0xff] 0.0
          %442 = vst [vmem:[#allocation2] sm:$0xff] 0.0
          %443 = vst [vmem:[#allocation2 + $0x8] sm:$0xff] 0.0
          %444 = vst [vmem:[#allocation2 + $0x10] sm:$0xff] 0.0
          %445 = vst [vmem:[#allocation2 + $0x18] sm:$0xff] 0.0
          %446 = vst [vmem:[#allocation2 + $0x20] sm:$0xff] 0.0
          %447 = vst [vmem:[#allocation2 + $0x28] sm:$0xff] 0.0
          %448 = vst [vmem:[#allocation2 + $0x30] sm:$0xff] 0.0
          %449 = vst [vmem:[#allocation2 + $0x38] sm:$0xff] 0.0
          %450 = vst [vmem:[#allocation2 + $0x40] sm:$0xff] 0.0
          %451 = vst [vmem:[#allocation2 + $0x48] sm:$0xff] 0.0
          %452 = vst [vmem:[#allocation2 + $0x50] sm:$0xff] 0.0
          %453 = vst [vmem:[#allocation2 + $0x58] sm:$0xff] 0.0
          %454 = vst [vmem:[#allocation2 + $0x60] sm:$0xff] 0.0
          %455 = vst [vmem:[#allocation2 + $0x68] sm:$0xff] 0.0
          %456 = vst [vmem:[#allocation2 + $0x70] sm:$0xff] 0.0
          %457 = vst [vmem:[#allocation2 + $0x78] sm:$0xff] 0.0
          %458 = vst [vmem:[#allocation3] sm:$0xff] 0.0
          %459 = vst [vmem:[#allocation3 + $0x8] sm:$0xff] 0.0
          %460 = vst [vmem:[#allocation3 + $0x10] sm:$0xff] 0.0
          %461 = vst [vmem:[#allocation3 + $0x18] sm:$0xff] 0.0
          %462 = vst [vmem:[#allocation3 + $0x20] sm:$0xff] 0.0
          %463 = vst [vmem:[#allocation3 + $0x28] sm:$0xff] 0.0
          %464 = vst [vmem:[#allocation3 + $0x30] sm:$0xff] 0.0
          %465 = vst [vmem:[#allocation3 + $0x38] sm:$0xff] 0.0
          %466 = vst [vmem:[#allocation3 + $0x40] sm:$0xff] 0.0
          %467 = vst [vmem:[#allocation3 + $0x48] sm:$0xff] 0.0
          %468 = vst [vmem:[#allocation3 + $0x50] sm:$0xff] 0.0
          %469 = vst [vmem:[#allocation3 + $0x58] sm:$0xff] 0.0
          %470 = vst [vmem:[#allocation3 + $0x60] sm:$0xff] 0.0
          %471 = vst [vmem:[#allocation3 + $0x68] sm:$0xff] 0.0
          %472 = vst [vmem:[#allocation3 + $0x70] sm:$0xff] 0.0
          %473 = vst [vmem:[#allocation3 + $0x78] sm:$0xff] 0.0
          %474 = vst [vmem:[#allocation4] sm:$0xff] 0.0
          %475 = vst [vmem:[#allocation4 + $0x8] sm:$0xff] 0.0
          %476 = vst [vmem:[#allocation4 + $0x10] sm:$0xff] 0.0
          %477 = vst [vmem:[#allocation4 + $0x18] sm:$0xff] 0.0
          %478 = vst [vmem:[#allocation4 + $0x20] sm:$0xff] 0.0
          %479 = vst [vmem:[#allocation4 + $0x28] sm:$0xff] 0.0
          %480 = vst [vmem:[#allocation4 + $0x30] sm:$0xff] 0.0
          %481 = vst [vmem:[#allocation4 + $0x38] sm:$0xff] 0.0
          %482 = vst [vmem:[#allocation4 + $0x40] sm:$0xff] 0.0
          %483 = vst [vmem:[#allocation4 + $0x48] sm:$0xff] 0.0
          %484 = vst [vmem:[#allocation4 + $0x50] sm:$0xff] 0.0
          %485 = vst [vmem:[#allocation4 + $0x58] sm:$0xff] 0.0
          %486 = vst [vmem:[#allocation4 + $0x60] sm:$0xff] 0.0
          %487 = vst [vmem:[#allocation4 + $0x68] sm:$0xff] 0.0
          %488 = vst [vmem:[#allocation4 + $0x70] sm:$0xff] 0.0
          %489 = vst [vmem:[#allocation4 + $0x78] sm:$0xff] 0.0
        $region44: #{tpu_custom_call.1} parent=35 // pred_fallthru
          _
        %v490 = vld [vmem:[%s398] sm:$0xff]
        %v491 = vld [vmem:[%s398 + $0x8] sm:$0xff]
        %v492 = vld [vmem:[%s406] sm:$0xff]
        %494 = vset.pattern.permute.xlu0 0
        %495 = vperm.xlu0 %494, %v490
        %v496 = vpop.permute.xlu0 %495
        %499 = vset.pattern.permute.xlu0 0
        %500 = vperm.xlu0 %499, %v491
        %v501 = vpop.permute.xlu0 %500
        %v503 = vlaneseq
        %v504 = vshrl.u32 %v503, 7
        %v505 = vsub.s32 0, %v504
        %v506 = vrot.slane %v492, %v505
        %v507 = vmul.f32 %v496, %v506
        %v508 = vmul.f32 %v501, %v506
        %509 = vset.pattern.permute.xlu0 1
        %510 = vperm.xlu0 %509, %v490
        %v511 = vpop.permute.xlu0 %510
        %513 = vset.pattern.permute.xlu0 1
        %514 = vperm.xlu0 %513, %v491
        %v515 = vpop.permute.xlu0 %514
        %v517 = vlaneseq
        %v518 = vshrl.u32 %v517, 7
        %v519 = vsub.s32 1, %v518
        %v520 = vrot.slane %v492, %v519
        %v521 = vmul.f32 %v511, %v520
        %v522 = vmul.f32 %v515, %v520
        %v523 = vadd.f32 %v507, %v521
        %v524 = vadd.f32 %v508, %v522
        %525 = vset.pattern.permute.xlu0 2
        %526 = vperm.xlu0 %525, %v490
        %v527 = vpop.permute.xlu0 %526
        %529 = vset.pattern.permute.xlu0 2
        %530 = vperm.xlu0 %529, %v491
        %v531 = vpop.permute.xlu0 %530
        %v533 = vlaneseq
        %v534 = vshrl.u32 %v533, 7
        %v535 = vsub.s32 2, %v534
        %v536 = vrot.slane %v492, %v535
        %v537 = vmul.f32 %v527, %v536
        %v538 = vmul.f32 %v531, %v536
        %v539 = vadd.f32 %v523, %v537
        %v540 = vadd.f32 %v524, %v538
        %v541 = vand.u32 2147483647, %v539
        %vm542 = vcmp.le.f32.partialorder %v541, 0.7853982
        %vm543 = vcmp.lt.s32.totalorder %v539, 0
        %v544 = vand.u32 %v539, 2139095040
        %v545 = vshrl.u32 %v544, 23
        %v546 = vsub.s32 %v545, 127
        %v547 = vand.u32 2147483647, %v539
        %v548 = vand.u32 %v547, 8388607
        %v549 = vor.u32 %v548, 8388608
        %v550 = vsub.s32 0, %v549
        %v551 = vadd.s32 %v546, 1
        %vm552 = vcmp.gt.s32.totalorder %v551, 0
        %v553 = vsel %vm552, %v551, 0
        %v554 = vshrl.u32 %v553, 5
        %v555 = vand.u32 %v553, 31
        %v556 = vsub.s32 32, %v555
        %v557 = vshrl.u32 683565275, %v556
        %v558 = vshll.u32 683565275, %v555
        %v559 = vshrl.u32 2475754826, %v556
        %v560 = vor.u32 %v558, %v559
        %v561 = vshll.u32 2475754826, %v555
        %v562 = vshrl.u32 2131351028, %v556
        %v563 = vor.u32 %v561, %v562
        %v564 = vshll.u32 2131351028, %v555
        %v565 = vshrl.u32 2102212464, %v556
        %v566 = vor.u32 %v564, %v565
        %v567 = vshll.u32 2102212464, %v555
        %v568 = vshrl.u32 920167782, %v556
        %v569 = vor.u32 %v567, %v568
        %v570 = vshll.u32 920167782, %v555
        %v571 = vshrl.u32 1326507024, %v556
        %v572 = vor.u32 %v570, %v571
        %vm573 = vcmp.lt.s32.totalorder %v554, 1
        %vm574 = vcmp.lt.s32.totalorder %v554, 2
        %vm575 = vcmp.lt.s32.totalorder %v554, 3
        %vm576 = vcmp.lt.s32.totalorder %v554, 4
        %v577 = vsel %vm573, %v557, %v560
        %v578 = vsel %vm576, %v566, 2102212464
        %v579 = vsel %vm575, %v563, %v578
        %v580 = vsel %vm574, %v577, %v579
        %v581 = vsel %vm573, %v560, %v563
        %v582 = vsel %vm576, %v569, 920167782
        %v583 = vsel %vm575, %v566, %v582
        %v584 = vsel %vm574, %v581, %v583
        %v585 = vsel %vm573, %v563, %v566
        %v586 = vsel %vm576, %v572, 1326507024
        %v587 = vsel %vm575, %v569, %v586
        %v588 = vsel %vm574, %v585, %v587
        %v589 = vshll.u32 %v549, 8
        %v590 = vmul.u32.u64.compose %v589, %v588
        %v591 = vextract.low.u32 %v590
        %v592 = vextract.high.u32 %v590
        %v593 = vmul.u32.u64.compose %v589, %v584
        %v594 = vextract.low.u32 %v593
        %v595 = vextract.high.u32 %v593
        %v596 = vmul.u32 %v589, %v580
        %v597 = vadd.s32 %v592, %v594
        %vm598 = vc.u32 %v592, %v594
        %v599 = vadd.s32 %v595, 1
        %v600 = vsel %vm598, %v599, %v595
        %v601 = vadd.s32 %v596, %v600
        %v602 = vadd.s32 %v601, 536870912
        %v603 = vshrl.u32 %v602, 30
        %v604 = vshll.u32 %v603, 30
        %v605 = vsub.s32 %v601, %v604
        %vm606 = vcmp.lt.s32.totalorder %v605, 0
        %v607 = vsub.s32 0, %v605
        %v608 = vsel %vm606, %v607, %v605
        %v609 = vclz %v608
        %v610 = vsub.s32 %v609, 2
        %vm611 = vcmp.gt.s32.totalorder 0, %v610
        %v612 = vsel %vm611, 0, %v610
        %v613 = vsub.s32 32, %v612
        %v614 = vshll.u32 %v605, %v612
        %v615 = vshrl.u32 %v597, %v613
        %v616 = vor.u32 %v614, %v615
        %v617 = vsub.s32 4294967266, %v612
        %v618 = vadd.s32 %v617, 127
        %v619 = vshll.u32 %v618, 23
        %v620 = vor.u32 4788187, %v619
        %v621 = vand.u32 2147483647, %v620
        %v623 = vcvt.s32.f32 %v616
        %v624 = vmul.f32 %v623, %v621
        %v625 = vxor.u32 %v624, 2147483648
        %v626 = vsel %vm543, %v625, %v624
        %v627 = vsub.s32 4, %v603
        %v628 = vsel %vm543, %v627, %v603
        %v629 = vsel %vm542, %v539, %v626
        %v630 = vsel %vm542, 0, %v628
        %v631 = vcosq.f32.pop %v629
        %v632 = vsinq.f32.pop %v629
        %vm633 = vweird.f32 %v539
        %v634 = vand.u32 %v630, 3
        %vm635 = vcmp.lt.s32.totalorder %v634, 2
        %vm636 = vcmp.eq.s32.totalorder %v634, 0
        %v637 = vxor.u32 %v632, 2147483648
        %v638 = vsel %vm636, %v631, %v637
        %vm639 = vcmp.eq.s32.totalorder %v634, 2
        %v640 = vxor.u32 %v631, 2147483648
        %v641 = vsel %vm639, %v640, %v632
        %v642 = vsel %vm635, %v638, %v641
        %v643 = vsel %vm633, nan, %v642
        %v644 = vand.u32 2147483647, %v540
        %vm645 = vcmp.le.f32.partialorder %v644, 0.7853982
        %vm646 = vcmp.lt.s32.totalorder %v540, 0
        %v647 = vand.u32 %v540, 2139095040
        %v648 = vshrl.u32 %v647, 23
        %v649 = vsub.s32 %v648, 127
        %v650 = vand.u32 2147483647, %v540
        %v651 = vand.u32 %v650, 8388607
        %v652 = vor.u32 %v651, 8388608
        %v653 = vsub.s32 0, %v652
        %v654 = vadd.s32 %v649, 1
        %vm655 = vcmp.gt.s32.totalorder %v654, 0
        %v656 = vsel %vm655, %v654, 0
        %v657 = vshrl.u32 %v656, 5
        %v658 = vand.u32 %v656, 31
        %v659 = vsub.s32 32, %v658
        %v660 = vshrl.u32 683565275, %v659
        %v661 = vshll.u32 683565275, %v658
        %v662 = vshrl.u32 2475754826, %v659
        %v663 = vor.u32 %v661, %v662
        %v664 = vshll.u32 2475754826, %v658
        %v665 = vshrl.u32 2131351028, %v659
        %v666 = vor.u32 %v664, %v665
        %v667 = vshll.u32 2131351028, %v658
        %v668 = vshrl.u32 2102212464, %v659
        %v669 = vor.u32 %v667, %v668
        %v670 = vshll.u32 2102212464, %v658
        %v671 = vshrl.u32 920167782, %v659
        %v672 = vor.u32 %v670, %v671
        %v673 = vshll.u32 920167782, %v658
        %v674 = vshrl.u32 1326507024, %v659
        %v675 = vor.u32 %v673, %v674
        %vm676 = vcmp.lt.s32.totalorder %v657, 1
        %vm677 = vcmp.lt.s32.totalorder %v657, 2
        %vm678 = vcmp.lt.s32.totalorder %v657, 3
        %vm679 = vcmp.lt.s32.totalorder %v657, 4
        %v680 = vsel %vm676, %v660, %v663
        %v681 = vsel %vm679, %v669, 2102212464
        %v682 = vsel %vm678, %v666, %v681
        %v683 = vsel %vm677, %v680, %v682
        %v684 = vsel %vm676, %v663, %v666
        %v685 = vsel %vm679, %v672, 920167782
        %v686 = vsel %vm678, %v669, %v685
        %v687 = vsel %vm677, %v684, %v686
        %v688 = vsel %vm676, %v666, %v669
        %v689 = vsel %vm679, %v675, 1326507024
        %v690 = vsel %vm678, %v672, %v689
        %v691 = vsel %vm677, %v688, %v690
        %v692 = vshll.u32 %v652, 8
        %v693 = vmul.u32.u64.compose %v692, %v691
        %v694 = vextract.low.u32 %v693
        %v695 = vextract.high.u32 %v693
        %v696 = vmul.u32.u64.compose %v692, %v687
        %v697 = vextract.low.u32 %v696
        %v698 = vextract.high.u32 %v696
        %v699 = vmul.u32 %v692, %v683
        %v700 = vadd.s32 %v695, %v697
        %vm701 = vc.u32 %v695, %v697
        %v702 = vadd.s32 %v698, 1
        %v703 = vsel %vm701, %v702, %v698
        %v704 = vadd.s32 %v699, %v703
        %v705 = vadd.s32 %v704, 536870912
        %v706 = vshrl.u32 %v705, 30
        %v707 = vshll.u32 %v706, 30
        %v708 = vsub.s32 %v704, %v707
        %vm709 = vcmp.lt.s32.totalorder %v708, 0
        %v710 = vsub.s32 0, %v708
        %v711 = vsel %vm709, %v710, %v708
        %v712 = vclz %v711
        %v713 = vsub.s32 %v712, 2
        %vm714 = vcmp.gt.s32.totalorder 0, %v713
        %v715 = vsel %vm714, 0, %v713
        %v716 = vsub.s32 32, %v715
        %v717 = vshll.u32 %v708, %v715
        %v718 = vshrl.u32 %v700, %v716
        %v719 = vor.u32 %v717, %v718
        %v720 = vsub.s32 4294967266, %v715
        %v721 = vadd.s32 %v720, 127
        %v722 = vshll.u32 %v721, 23
        %v723 = vor.u32 4788187, %v722
        %v724 = vand.u32 2147483647, %v723
        %v726 = vcvt.s32.f32 %v719
        %v727 = vmul.f32 %v726, %v724
        %v728 = vxor.u32 %v727, 2147483648
        %v729 = vsel %vm646, %v728, %v727
        %v730 = vsub.s32 4, %v706
        %v731 = vsel %vm646, %v730, %v706
        %v732 = vsel %vm645, %v540, %v729
        %v733 = vsel %vm645, 0, %v731
        %v734 = vcosq.f32.pop %v732
        %v735 = vsinq.f32.pop %v732
        %vm736 = vweird.f32 %v540
        %v737 = vand.u32 %v733, 3
        %vm738 = vcmp.lt.s32.totalorder %v737, 2
        %vm739 = vcmp.eq.s32.totalorder %v737, 0
        %v740 = vxor.u32 %v735, 2147483648
        %v741 = vsel %vm739, %v734, %v740
        %vm742 = vcmp.eq.s32.totalorder %v737, 2
        %v743 = vxor.u32 %v734, 2147483648
        %v744 = vsel %vm742, %v743, %v735
        %v745 = vsel %vm738, %v741, %v744
        %v746 = vsel %vm736, nan, %v745
        %v747 = vand.u32 2147483647, %v539
        %vm748 = vcmp.le.f32.partialorder %v747, 0.7853982
        %vm749 = vcmp.lt.s32.totalorder %v539, 0
        %v750 = vand.u32 %v539, 2139095040
        %v751 = vshrl.u32 %v750, 23
        %v752 = vsub.s32 %v751, 127
        %v753 = vand.u32 2147483647, %v539
        %v754 = vand.u32 %v753, 8388607
        %v755 = vor.u32 %v754, 8388608
        %v756 = vsub.s32 0, %v755
        %v757 = vadd.s32 %v752, 1
        %vm758 = vcmp.gt.s32.totalorder %v757, 0
        %v759 = vsel %vm758, %v757, 0
        %v760 = vshrl.u32 %v759, 5
        %v761 = vand.u32 %v759, 31
        %v762 = vsub.s32 32, %v761
        %v763 = vshrl.u32 683565275, %v762
        %v764 = vshll.u32 683565275, %v761
        %v765 = vshrl.u32 2475754826, %v762
        %v766 = vor.u32 %v764, %v765
        %v767 = vshll.u32 2475754826, %v761
        %v768 = vshrl.u32 2131351028, %v762
        %v769 = vor.u32 %v767, %v768
        %v770 = vshll.u32 2131351028, %v761
        %v771 = vshrl.u32 2102212464, %v762
        %v772 = vor.u32 %v770, %v771
        %v773 = vshll.u32 2102212464, %v761
        %v774 = vshrl.u32 920167782, %v762
        %v775 = vor.u32 %v773, %v774
        %v776 = vshll.u32 920167782, %v761
        %v777 = vshrl.u32 1326507024, %v762
        %v778 = vor.u32 %v776, %v777
        %vm779 = vcmp.lt.s32.totalorder %v760, 1
        %vm780 = vcmp.lt.s32.totalorder %v760, 2
        %vm781 = vcmp.lt.s32.totalorder %v760, 3
        %vm782 = vcmp.lt.s32.totalorder %v760, 4
        %v783 = vsel %vm779, %v763, %v766
        %v784 = vsel %vm782, %v772, 2102212464
        %v785 = vsel %vm781, %v769, %v784
        %v786 = vsel %vm780, %v783, %v785
        %v787 = vsel %vm779, %v766, %v769
        %v788 = vsel %vm782, %v775, 920167782
        %v789 = vsel %vm781, %v772, %v788
        %v790 = vsel %vm780, %v787, %v789
        %v791 = vsel %vm779, %v769, %v772
        %v792 = vsel %vm782, %v778, 1326507024
        %v793 = vsel %vm781, %v775, %v792
        %v794 = vsel %vm780, %v791, %v793
        %v795 = vshll.u32 %v755, 8
        %v796 = vmul.u32.u64.compose %v795, %v794
        %v797 = vextract.low.u32 %v796
        %v798 = vextract.high.u32 %v796
        %v799 = vmul.u32.u64.compose %v795, %v790
        %v800 = vextract.low.u32 %v799
        %v801 = vextract.high.u32 %v799
        %v802 = vmul.u32 %v795, %v786
        %v803 = vadd.s32 %v798, %v800
        %vm804 = vc.u32 %v798, %v800
        %v805 = vadd.s32 %v801, 1
        %v806 = vsel %vm804, %v805, %v801
        %v807 = vadd.s32 %v802, %v806
        %v808 = vadd.s32 %v807, 536870912
        %v809 = vshrl.u32 %v808, 30
        %v810 = vshll.u32 %v809, 30
        %v811 = vsub.s32 %v807, %v810
        %vm812 = vcmp.lt.s32.totalorder %v811, 0
        %v813 = vsub.s32 0, %v811
        %v814 = vsel %vm812, %v813, %v811
        %v815 = vclz %v814
        %v816 = vsub.s32 %v815, 2
        %vm817 = vcmp.gt.s32.totalorder 0, %v816
        %v818 = vsel %vm817, 0, %v816
        %v819 = vsub.s32 32, %v818
        %v820 = vshll.u32 %v811, %v818
        %v821 = vshrl.u32 %v803, %v819
        %v822 = vor.u32 %v820, %v821
        %v823 = vsub.s32 4294967266, %v818
        %v824 = vadd.s32 %v823, 127
        %v825 = vshll.u32 %v824, 23
        %v826 = vor.u32 4788187, %v825
        %v827 = vand.u32 2147483647, %v826
        %v829 = vcvt.s32.f32 %v822
        %v830 = vmul.f32 %v829, %v827
        %v831 = vxor.u32 %v830, 2147483648
        %v832 = vsel %vm749, %v831, %v830
        %v833 = vsub.s32 4, %v809
        %v834 = vsel %vm749, %v833, %v809
        %v835 = vsel %vm748, %v539, %v832
        %v836 = vsel %vm748, 0, %v834
        %v837 = vcosq.f32.pop %v835
        %v838 = vsinq.f32.pop %v835
        %vm839 = vweird.f32 %v539
        %v840 = vadd.s32 %v836, 3
        %v841 = vand.u32 %v840, 3
        %vm842 = vcmp.lt.s32.totalorder %v841, 2
        %vm843 = vcmp.eq.s32.totalorder %v841, 0
        %v844 = vxor.u32 %v838, 2147483648
        %v845 = vsel %vm843, %v837, %v844
        %vm846 = vcmp.eq.s32.totalorder %v841, 2
        %v847 = vxor.u32 %v837, 2147483648
        %v848 = vsel %vm846, %v847, %v838
        %v849 = vsel %vm842, %v845, %v848
        %v850 = vsel %vm839, nan, %v849
        %v851 = vand.u32 2147483647, %v540
        %vm852 = vcmp.le.f32.partialorder %v851, 0.7853982
        %vm853 = vcmp.lt.s32.totalorder %v540, 0
        %v854 = vand.u32 %v540, 2139095040
        %v855 = vshrl.u32 %v854, 23
        %v856 = vsub.s32 %v855, 127
        %v857 = vand.u32 2147483647, %v540
        %v858 = vand.u32 %v857, 8388607
        %v859 = vor.u32 %v858, 8388608
        %v860 = vsub.s32 0, %v859
        %v861 = vadd.s32 %v856, 1
        %vm862 = vcmp.gt.s32.totalorder %v861, 0
        %v863 = vsel %vm862, %v861, 0
        %v864 = vshrl.u32 %v863, 5
        %v865 = vand.u32 %v863, 31
        %v866 = vsub.s32 32, %v865
        %v867 = vshrl.u32 683565275, %v866
        %v868 = vshll.u32 683565275, %v865
        %v869 = vshrl.u32 2475754826, %v866
        %v870 = vor.u32 %v868, %v869
        %v871 = vshll.u32 2475754826, %v865
        %v872 = vshrl.u32 2131351028, %v866
        %v873 = vor.u32 %v871, %v872
        %v874 = vshll.u32 2131351028, %v865
        %v875 = vshrl.u32 2102212464, %v866
        %v876 = vor.u32 %v874, %v875
        %v877 = vshll.u32 2102212464, %v865
        %v878 = vshrl.u32 920167782, %v866
        %v879 = vor.u32 %v877, %v878
        %v880 = vshll.u32 920167782, %v865
        %v881 = vshrl.u32 1326507024, %v866
        %v882 = vor.u32 %v880, %v881
        %vm883 = vcmp.lt.s32.totalorder %v864, 1
        %vm884 = vcmp.lt.s32.totalorder %v864, 2
        %vm885 = vcmp.lt.s32.totalorder %v864, 3
        %vm886 = vcmp.lt.s32.totalorder %v864, 4
        %v887 = vsel %vm883, %v867, %v870
        %v888 = vsel %vm886, %v876, 2102212464
        %v889 = vsel %vm885, %v873, %v888
        %v890 = vsel %vm884, %v887, %v889
        %v891 = vsel %vm883, %v870, %v873
        %v892 = vsel %vm886, %v879, 920167782
        %v893 = vsel %vm885, %v876, %v892
        %v894 = vsel %vm884, %v891, %v893
        %v895 = vsel %vm883, %v873, %v876
        %v896 = vsel %vm886, %v882, 1326507024
        %v897 = vsel %vm885, %v879, %v896
        %v898 = vsel %vm884, %v895, %v897
        %v899 = vshll.u32 %v859, 8
        %v900 = vmul.u32.u64.compose %v899, %v898
        %v901 = vextract.low.u32 %v900
        %v902 = vextract.high.u32 %v900
        %v903 = vmul.u32.u64.compose %v899, %v894
        %v904 = vextract.low.u32 %v903
        %v905 = vextract.high.u32 %v903
        %v906 = vmul.u32 %v899, %v890
        %v907 = vadd.s32 %v902, %v904
        %vm908 = vc.u32 %v902, %v904
        %v909 = vadd.s32 %v905, 1
        %v910 = vsel %vm908, %v909, %v905
        %v911 = vadd.s32 %v906, %v910
        %v912 = vadd.s32 %v911, 536870912
        %v913 = vshrl.u32 %v912, 30
        %v914 = vshll.u32 %v913, 30
        %v915 = vsub.s32 %v911, %v914
        %vm916 = vcmp.lt.s32.totalorder %v915, 0
        %v917 = vsub.s32 0, %v915
        %v918 = vsel %vm916, %v917, %v915
        %v919 = vclz %v918
        %v920 = vsub.s32 %v919, 2
        %vm921 = vcmp.gt.s32.totalorder 0, %v920
        %v922 = vsel %vm921, 0, %v920
        %v923 = vsub.s32 32, %v922
        %v924 = vshll.u32 %v915, %v922
        %v925 = vshrl.u32 %v907, %v923
        %v926 = vor.u32 %v924, %v925
        %v927 = vsub.s32 4294967266, %v922
        %v928 = vadd.s32 %v927, 127
        %v929 = vshll.u32 %v928, 23
        %v930 = vor.u32 4788187, %v929
        %v931 = vand.u32 2147483647, %v930
        %v933 = vcvt.s32.f32 %v926
        %v934 = vmul.f32 %v933, %v931
        %v935 = vxor.u32 %v934, 2147483648
        %v936 = vsel %vm853, %v935, %v934
        %v937 = vsub.s32 4, %v913
        %v938 = vsel %vm853, %v937, %v913
        %v939 = vsel %vm852, %v540, %v936
        %v940 = vsel %vm852, 0, %v938
        %v941 = vcosq.f32.pop %v939
        %v942 = vsinq.f32.pop %v939
        %vm943 = vweird.f32 %v540
        %v944 = vadd.s32 %v940, 3
        %v945 = vand.u32 %v944, 3
        %vm946 = vcmp.lt.s32.totalorder %v945, 2
        %vm947 = vcmp.eq.s32.totalorder %v945, 0
        %v948 = vxor.u32 %v942, 2147483648
        %v949 = vsel %vm947, %v941, %v948
        %vm950 = vcmp.eq.s32.totalorder %v945, 2
        %v951 = vxor.u32 %v941, 2147483648
        %v952 = vsel %vm950, %v951, %v942
        %v953 = vsel %vm946, %v949, %v952
        %v954 = vsel %vm943, nan, %v953
        %v955 = vld [vmem:[%s415] sm:$0xff]
        %v956 = vld [vmem:[%s415 + $0x8] sm:$0xff]
        %v957 = vld [vmem:[%s375] sm:$0xff]
        %v958 = vld [vmem:[%s375 + $0x8] sm:$0xff]
        %v959 = vld [vmem:[%s375 + $0x10] sm:$0xff]
        %v960 = vld [vmem:[%s375 + $0x18] sm:$0xff]
        %v961 = vld [vmem:[%s375 + $0x20] sm:$0xff]
        %v962 = vld [vmem:[%s375 + $0x28] sm:$0xff]
        %v963 = vld [vmem:[%s375 + $0x30] sm:$0xff]
        %v964 = vld [vmem:[%s375 + $0x38] sm:$0xff]
        %v965 = vld [vmem:[%s375 + $0x40] sm:$0xff]
        %v966 = vld [vmem:[%s375 + $0x48] sm:$0xff]
        %v967 = vld [vmem:[%s375 + $0x50] sm:$0xff]
        %v968 = vld [vmem:[%s375 + $0x58] sm:$0xff]
        %v969 = vld [vmem:[%s375 + $0x60] sm:$0xff]
        %v970 = vld [vmem:[%s375 + $0x68] sm:$0xff]
        %v971 = vld [vmem:[%s375 + $0x70] sm:$0xff]
        %v972 = vld [vmem:[%s375 + $0x78] sm:$0xff]
        %973 = vxpose.xlu0.b32.start [1/16] %v643, 128
        %974 = vxpose.xlu0.b32.cont [2/16] %v746, 128
        %975 = vxpose.xlu0.b32.cont [3/16] 0.0, 128
        %976 = vxpose.xlu0.b32.cont [4/16] 0.0, 128
        %977 = vxpose.xlu0.b32.cont [5/16] 0.0, 128
        %978 = vxpose.xlu0.b32.cont [6/16] 0.0, 128
        %979 = vxpose.xlu0.b32.cont [7/16] 0.0, 128
        %980 = vxpose.xlu0.b32.cont [8/16] 0.0, 128
        %981 = vxpose.xlu0.b32.cont [9/16] 0.0, 128
        %982 = vxpose.xlu0.b32.cont [10/16] 0.0, 128
        %983 = vxpose.xlu0.b32.cont [11/16] 0.0, 128
        %984 = vxpose.xlu0.b32.cont [12/16] 0.0, 128
        %985 = vxpose.xlu0.b32.cont [13/16] 0.0, 128
        %986 = vxpose.xlu0.b32.cont [14/16] 0.0, 128
        %987 = vxpose.xlu0.b32.cont [15/16] 0.0, 128
        %988 = vxpose.xlu0.b32.end [16/16] 0.0, 128
        %v989 = vpop.trf.xlu0
        %v990 = vpop.trf.xlu0
        %v991 = vpop.trf.xlu0
        %v992 = vpop.trf.xlu0
        %v993 = vpop.trf.xlu0
        %v994 = vpop.trf.xlu0
        %v995 = vpop.trf.xlu0
        %v996 = vpop.trf.xlu0
        %v997 = vpop.trf.xlu0
        %v998 = vpop.trf.xlu0
        %v999 = vpop.trf.xlu0
        %v1000 = vpop.trf.xlu0
        %v1001 = vpop.trf.xlu0
        %v1002 = vpop.trf.xlu0
        %v1003 = vpop.trf.xlu0
        %v1004 = vpop.trf.xlu0
        %vm1005 = vcmask 130048
        %v1007 = vsel %vm1005, %v989, 0
        %v1010 = vsel %vm1005, %v990, 0
        %v1013 = vsel %vm1005, %v991, 0
        %v1016 = vsel %vm1005, %v992, 0
        %v1019 = vsel %vm1005, %v993, 0
        %v1022 = vsel %vm1005, %v994, 0
        %v1025 = vsel %vm1005, %v995, 0
        %v1028 = vsel %vm1005, %v996, 0
        %v1031 = vsel %vm1005, %v997, 0
        %v1034 = vsel %vm1005, %v998, 0
        %v1037 = vsel %vm1005, %v999, 0
        %v1040 = vsel %vm1005, %v1000, 0
        %v1043 = vsel %vm1005, %v1001, 0
        %v1046 = vsel %vm1005, %v1002, 0
        %v1049 = vsel %vm1005, %v1003, 0
        %v1052 = vsel %vm1005, %v1004, 0
        %1054 = vmatprep.subr.mxu0 0.0
        %1055 = vmatpush1.msra.mxu0 %v955
        %1056 = vmatprep.subr.mxu0 0.0
        %1057 = vmatpush1.msra.mxu0 %v956
        %1058 = vmatprep.subr.mxu0 0.0
        %1059 = vmatpush1.msra.mxu0 0.0
        %1060 = vmatprep.subr.mxu0 0.0
        %1061 = vmatpush1.msra.mxu0 0.0
        %1062 = vmatprep.subr.mxu0 0.0
        %1063 = vmatpush1.msra.mxu0 0.0
        %1064 = vmatprep.subr.mxu0 0.0
        %1065 = vmatpush1.msra.mxu0 0.0
        %1066 = vmatprep.subr.mxu0 0.0
        %1067 = vmatpush1.msra.mxu0 0.0
        %1068 = vmatprep.subr.mxu0 0.0
        %1069 = vmatpush1.msra.mxu0 0.0
        %1070 = vmatprep.subr.mxu0 0.0
        %1071 = vmatpush1.msra.mxu0 0.0
        %1072 = vmatprep.subr.mxu0 0.0
        %1073 = vmatpush1.msra.mxu0 0.0
        %1074 = vmatprep.subr.mxu0 0.0
        %1075 = vmatpush1.msra.mxu0 0.0
        %1076 = vmatprep.subr.mxu0 0.0
        %1077 = vmatpush1.msra.mxu0 0.0
        %1078 = vmatprep.subr.mxu0 0.0
        %1079 = vmatpush1.msra.mxu0 0.0
        %1080 = vmatprep.subr.mxu0 0.0
        %1081 = vmatpush1.msra.mxu0 0.0
        %1082 = vmatprep.subr.mxu0 0.0
        %1083 = vmatpush1.msra.mxu0 0.0
        %1084 = vmatprep.subr.mxu0 0.0
        %1085 = vmatpush1.msra.mxu0 0.0
        %1086 = vmatprep.subr.mxu0 0.0
        %1087 = vmatpush1.msra.mxu0 0.0
        %1088 = vmatprep.subr.mxu0 0.0
        %1089 = vmatpush1.msra.mxu0 0.0
        %1090 = vmatprep.subr.mxu0 0.0
        %1091 = vmatpush1.msra.mxu0 0.0
        %1092 = vmatprep.subr.mxu0 0.0
        %1093 = vmatpush1.msra.mxu0 0.0
        %1094 = vmatprep.subr.mxu0 0.0
        %1095 = vmatpush1.msra.mxu0 0.0
        %1096 = vmatprep.subr.mxu0 0.0
        %1097 = vmatpush1.msra.mxu0 0.0
        %1098 = vmatprep.subr.mxu0 0.0
        %1099 = vmatpush1.msra.mxu0 0.0
        %1100 = vmatprep.subr.mxu0 0.0
        %1101 = vmatpush1.msra.mxu0 0.0
        %1102 = vmatprep.subr.mxu0 0.0
        %1103 = vmatpush1.msra.mxu0 0.0
        %1104 = vmatprep.subr.mxu0 0.0
        %1105 = vmatpush1.msra.mxu0 0.0
        %1106 = vmatprep.subr.mxu0 0.0
        %1107 = vmatpush1.msra.mxu0 0.0
        %1108 = vmatprep.subr.mxu0 0.0
        %1109 = vmatpush1.msra.mxu0 0.0
        %1110 = vmatprep.subr.mxu0 0.0
        %1111 = vmatpush1.msra.mxu0 0.0
        %1112 = vmatprep.subr.mxu0 0.0
        %1113 = vmatpush1.msra.mxu0 0.0
        %1114 = vmatprep.subr.mxu0 0.0
        %1115 = vmatpush1.msra.mxu0 0.0
        %1116 = vmatprep.subr.mxu0 0.0
        %1117 = vmatpush1.msra.mxu0 0.0
        %1118 = vmatprep.mubr.f32.mxu0 0.0
        %1119 = vmatmul.mubr.f32.gmra.mrb[0].mxu0 %v1007
        %v1120 = vpop.f32.mrb[0].mxu0
        %v1121 = vadd.f32 0.0, %v1120
        %v1122 = vpop.f32.mrb[0].mxu0
        %1123 = vmatprep.mubr.f32.mxu0 0.0
        %1124 = vmatmul.mubr.f32.gmra.mrb[0].mxu0 %v1010
        %v1125 = vpop.f32.mrb[0].mxu0
        %v1126 = vadd.f32 0.0, %v1125
        %v1127 = vpop.f32.mrb[0].mxu0
        %1128 = vmatprep.mubr.f32.mxu0 0.0
        %1129 = vmatmul.mubr.f32.gmra.mrb[0].mxu0 %v1013
        %v1130 = vpop.f32.mrb[0].mxu0
        %v1131 = vadd.f32 0.0, %v1130
        %v1132 = vpop.f32.mrb[0].mxu0
        %1133 = vmatprep.mubr.f32.mxu0 0.0
        %1134 = vmatmul.mubr.f32.gmra.mrb[0].mxu0 %v1016
        %v1135 = vpop.f32.mrb[0].mxu0
        %v1136 = vadd.f32 0.0, %v1135
        %v1137 = vpop.f32.mrb[0].mxu0
        %1138 = vmatprep.mubr.f32.mxu0 0.0
        %1139 = vmatmul.mubr.f32.gmra.mrb[0].mxu0 %v1019
        %v1140 = vpop.f32.mrb[0].mxu0
        %v1141 = vadd.f32 0.0, %v1140
        %v1142 = vpop.f32.mrb[0].mxu0
        %1143 = vmatprep.mubr.f32.mxu0 0.0
        %1144 = vmatmul.mubr.f32.gmra.mrb[0].mxu0 %v1022
        %v1145 = vpop.f32.mrb[0].mxu0
        %v1146 = vadd.f32 0.0, %v1145
        %v1147 = vpop.f32.mrb[0].mxu0
        %1148 = vmatprep.mubr.f32.mxu0 0.0
        %1149 = vmatmul.mubr.f32.gmra.mrb[0].mxu0 %v1025
        %v1150 = vpop.f32.mrb[0].mxu0
        %v1151 = vadd.f32 0.0, %v1150
        %v1152 = vpop.f32.mrb[0].mxu0
        %1153 = vmatprep.mubr.f32.mxu0 0.0
        %1154 = vmatmul.mubr.f32.gmra.mrb[0].mxu0 %v1028
        %v1155 = vpop.f32.mrb[0].mxu0
        %v1156 = vadd.f32 0.0, %v1155
        %v1157 = vpop.f32.mrb[0].mxu0
        %1158 = vmatprep.mubr.f32.mxu0 0.0
        %1159 = vmatmul.mubr.f32.gmra.mrb[0].mxu0 %v1031
        %v1160 = vpop.f32.mrb[0].mxu0
        %v1161 = vadd.f32 0.0, %v1160
        %v1162 = vpop.f32.mrb[0].mxu0
        %1163 = vmatprep.mubr.f32.mxu0 0.0
        %1164 = vmatmul.mubr.f32.gmra.mrb[0].mxu0 %v1034
        %v1165 = vpop.f32.mrb[0].mxu0
        %v1166 = vadd.f32 0.0, %v1165
        %v1167 = vpop.f32.mrb[0].mxu0
        %1168 = vmatprep.mubr.f32.mxu0 0.0
        %1169 = vmatmul.mubr.f32.gmra.mrb[0].mxu0 %v1037
        %v1170 = vpop.f32.mrb[0].mxu0
        %v1171 = vadd.f32 0.0, %v1170
        %v1172 = vpop.f32.mrb[0].mxu0
        %1173 = vmatprep.mubr.f32.mxu0 0.0
        %1174 = vmatmul.mubr.f32.gmra.mrb[0].mxu0 %v1040
        %v1175 = vpop.f32.mrb[0].mxu0
        %v1176 = vadd.f32 0.0, %v1175
        %v1177 = vpop.f32.mrb[0].mxu0
        %1178 = vmatprep.mubr.f32.mxu0 0.0
        %1179 = vmatmul.mubr.f32.gmra.mrb[0].mxu0 %v1043
        %v1180 = vpop.f32.mrb[0].mxu0
        %v1181 = vadd.f32 0.0, %v1180
        %v1182 = vpop.f32.mrb[0].mxu0
        %1183 = vmatprep.mubr.f32.mxu0 0.0
        %1184 = vmatmul.mubr.f32.gmra.mrb[0].mxu0 %v1046
        %v1185 = vpop.f32.mrb[0].mxu0
        %v1186 = vadd.f32 0.0, %v1185
        %v1187 = vpop.f32.mrb[0].mxu0
        %1188 = vmatprep.mubr.f32.mxu0 0.0
        %1189 = vmatmul.mubr.f32.gmra.mrb[0].mxu0 %v1049
        %v1190 = vpop.f32.mrb[0].mxu0
        %v1191 = vadd.f32 0.0, %v1190
        %v1192 = vpop.f32.mrb[0].mxu0
        %1193 = vmatprep.mubr.f32.mxu0 0.0
        %1194 = vmatmul.mubr.f32.gmra.mrb[0].mxu0 %v1052
        %v1195 = vpop.f32.mrb[0].mxu0
        %v1196 = vadd.f32 0.0, %v1195
        %v1197 = vpop.f32.mrb[0].mxu0
        %1198 = vdwg.mxu0
        %v1199 = vadd.f32 %v957, %v1121
        %v1200 = vadd.f32 %v958, %v1126
        %v1201 = vadd.f32 %v959, %v1131
        %v1202 = vadd.f32 %v960, %v1136
        %v1203 = vadd.f32 %v961, %v1141
        %v1204 = vadd.f32 %v962, %v1146
        %v1205 = vadd.f32 %v963, %v1151
        %v1206 = vadd.f32 %v964, %v1156
        %v1207 = vadd.f32 %v965, %v1161
        %v1208 = vadd.f32 %v966, %v1166
        %v1209 = vadd.f32 %v967, %v1171
        %v1210 = vadd.f32 %v968, %v1176
        %v1211 = vadd.f32 %v969, %v1181
        %v1212 = vadd.f32 %v970, %v1186
        %v1213 = vadd.f32 %v971, %v1191
        %v1214 = vadd.f32 %v972, %v1196
        %1215 = vst [vmem:[%s375] sm:$0xff] %v1199
        %1216 = vst [vmem:[%s375 + $0x8] sm:$0xff] %v1200
        %1217 = vst [vmem:[%s375 + $0x10] sm:$0xff] %v1201
        %1218 = vst [vmem:[%s375 + $0x18] sm:$0xff] %v1202
        %1219 = vst [vmem:[%s375 + $0x20] sm:$0xff] %v1203
        %1220 = vst [vmem:[%s375 + $0x28] sm:$0xff] %v1204
        %1221 = vst [vmem:[%s375 + $0x30] sm:$0xff] %v1205
        %1222 = vst [vmem:[%s375 + $0x38] sm:$0xff] %v1206
        %1223 = vst [vmem:[%s375 + $0x40] sm:$0xff] %v1207
        %1224 = vst [vmem:[%s375 + $0x48] sm:$0xff] %v1208
        %1225 = vst [vmem:[%s375 + $0x50] sm:$0xff] %v1209
        %1226 = vst [vmem:[%s375 + $0x58] sm:$0xff] %v1210
        %1227 = vst [vmem:[%s375 + $0x60] sm:$0xff] %v1211
        %1228 = vst [vmem:[%s375 + $0x68] sm:$0xff] %v1212
        %1229 = vst [vmem:[%s375 + $0x70] sm:$0xff] %v1213
        %1230 = vst [vmem:[%s375 + $0x78] sm:$0xff] %v1214
        %v1231 = vld [vmem:[#allocation2] sm:$0xff]
        %v1232 = vld [vmem:[#allocation2 + $0x8] sm:$0xff]
        %v1233 = vld [vmem:[#allocation2 + $0x10] sm:$0xff]
        %v1234 = vld [vmem:[#allocation2 + $0x18] sm:$0xff]
        %v1235 = vld [vmem:[#allocation2 + $0x20] sm:$0xff]
        %v1236 = vld [vmem:[#allocation2 + $0x28] sm:$0xff]
        %v1237 = vld [vmem:[#allocation2 + $0x30] sm:$0xff]
        %v1238 = vld [vmem:[#allocation2 + $0x38] sm:$0xff]
        %v1239 = vld [vmem:[#allocation2 + $0x40] sm:$0xff]
        %v1240 = vld [vmem:[#allocation2 + $0x48] sm:$0xff]
        %v1241 = vld [vmem:[#allocation2 + $0x50] sm:$0xff]
        %v1242 = vld [vmem:[#allocation2 + $0x58] sm:$0xff]
        %v1243 = vld [vmem:[#allocation2 + $0x60] sm:$0xff]
        %v1244 = vld [vmem:[#allocation2 + $0x68] sm:$0xff]
        %v1245 = vld [vmem:[#allocation2 + $0x70] sm:$0xff]
        %v1246 = vld [vmem:[#allocation2 + $0x78] sm:$0xff]
        %1247 = vxpose.xlu0.b32.start [1/16] %v850, 128
        %1248 = vxpose.xlu0.b32.cont [2/16] %v954, 128
        %1249 = vxpose.xlu0.b32.cont [3/16] 0.0, 128
        %1250 = vxpose.xlu0.b32.cont [4/16] 0.0, 128
        %1251 = vxpose.xlu0.b32.cont [5/16] 0.0, 128
        %1252 = vxpose.xlu0.b32.cont [6/16] 0.0, 128
        %1253 = vxpose.xlu0.b32.cont [7/16] 0.0, 128
        %1254 = vxpose.xlu0.b32.cont [8/16] 0.0, 128
        %1255 = vxpose.xlu0.b32.cont [9/16] 0.0, 128
        %1256 = vxpose.xlu0.b32.cont [10/16] 0.0, 128
        %1257 = vxpose.xlu0.b32.cont [11/16] 0.0, 128
        %1258 = vxpose.xlu0.b32.cont [12/16] 0.0, 128
        %1259 = vxpose.xlu0.b32.cont [13/16] 0.0, 128
        %1260 = vxpose.xlu0.b32.cont [14/16] 0.0, 128
        %1261 = vxpose.xlu0.b32.cont [15/16] 0.0, 128
        %1262 = vxpose.xlu0.b32.end [16/16] 0.0, 128
        %v1263 = vpop.trf.xlu0
        %v1264 = vpop.trf.xlu0
        %v1265 = vpop.trf.xlu0
        %v1266 = vpop.trf.xlu0
        %v1267 = vpop.trf.xlu0
        %v1268 = vpop.trf.xlu0
        %v1269 = vpop.trf.xlu0
        %v1270 = vpop.trf.xlu0
        %v1271 = vpop.trf.xlu0
        %v1272 = vpop.trf.xlu0
        %v1273 = vpop.trf.xlu0
        %v1274 = vpop.trf.xlu0
        %v1275 = vpop.trf.xlu0
        %v1276 = vpop.trf.xlu0
        %v1277 = vpop.trf.xlu0
        %v1278 = vpop.trf.xlu0
        %v1280 = vsel %vm1005, %v1263, 0
        %v1283 = vsel %vm1005, %v1264, 0
        %v1286 = vsel %vm1005, %v1265, 0
        %v1289 = vsel %vm1005, %v1266, 0
        %v1292 = vsel %vm1005, %v1267, 0
        %v1295 = vsel %vm1005, %v1268, 0
        %v1298 = vsel %vm1005, %v1269, 0
        %v1301 = vsel %vm1005, %v1270, 0
        %v1304 = vsel %vm1005, %v1271, 0
        %v1307 = vsel %vm1005, %v1272, 0
        %v1310 = vsel %vm1005, %v1273, 0
        %v1313 = vsel %vm1005, %v1274, 0
        %v1316 = vsel %vm1005, %v1275, 0
        %v1319 = vsel %vm1005, %v1276, 0
        %v1322 = vsel %vm1005, %v1277, 0
        %v1325 = vsel %vm1005, %v1278, 0
        %1327 = vmatprep.subr.mxu0 0.0
        %1328 = vmatpush1.msra.mxu0 %v955
        %1329 = vmatprep.subr.mxu0 0.0
        %1330 = vmatpush1.msra.mxu0 %v956
        %1331 = vmatprep.subr.mxu0 0.0
        %1332 = vmatpush1.msra.mxu0 0.0
        %1333 = vmatprep.subr.mxu0 0.0
        %1334 = vmatpush1.msra.mxu0 0.0
        %1335 = vmatprep.subr.mxu0 0.0
        %1336 = vmatpush1.msra.mxu0 0.0
        %1337 = vmatprep.subr.mxu0 0.0
        %1338 = vmatpush1.msra.mxu0 0.0
        %1339 = vmatprep.subr.mxu0 0.0
        %1340 = vmatpush1.msra.mxu0 0.0
        %1341 = vmatprep.subr.mxu0 0.0
        %1342 = vmatpush1.msra.mxu0 0.0
        %1343 = vmatprep.subr.mxu0 0.0
        %1344 = vmatpush1.msra.mxu0 0.0
        %1345 = vmatprep.subr.mxu0 0.0
        %1346 = vmatpush1.msra.mxu0 0.0
        %1347 = vmatprep.subr.mxu0 0.0
        %1348 = vmatpush1.msra.mxu0 0.0
        %1349 = vmatprep.subr.mxu0 0.0
        %1350 = vmatpush1.msra.mxu0 0.0
        %1351 = vmatprep.subr.mxu0 0.0
        %1352 = vmatpush1.msra.mxu0 0.0
        %1353 = vmatprep.subr.mxu0 0.0
        %1354 = vmatpush1.msra.mxu0 0.0
        %1355 = vmatprep.subr.mxu0 0.0
        %1356 = vmatpush1.msra.mxu0 0.0
        %1357 = vmatprep.subr.mxu0 0.0
        %1358 = vmatpush1.msra.mxu0 0.0
        %1359 = vmatprep.subr.mxu0 0.0
        %1360 = vmatpush1.msra.mxu0 0.0
        %1361 = vmatprep.subr.mxu0 0.0
        %1362 = vmatpush1.msra.mxu0 0.0
        %1363 = vmatprep.subr.mxu0 0.0
        %1364 = vmatpush1.msra.mxu0 0.0
        %1365 = vmatprep.subr.mxu0 0.0
        %1366 = vmatpush1.msra.mxu0 0.0
        %1367 = vmatprep.subr.mxu0 0.0
        %1368 = vmatpush1.msra.mxu0 0.0
        %1369 = vmatprep.subr.mxu0 0.0
        %1370 = vmatpush1.msra.mxu0 0.0
        %1371 = vmatprep.subr.mxu0 0.0
        %1372 = vmatpush1.msra.mxu0 0.0
        %1373 = vmatprep.subr.mxu0 0.0
        %1374 = vmatpush1.msra.mxu0 0.0
        %1375 = vmatprep.subr.mxu0 0.0
        %1376 = vmatpush1.msra.mxu0 0.0
        %1377 = vmatprep.subr.mxu0 0.0
        %1378 = vmatpush1.msra.mxu0 0.0
        %1379 = vmatprep.subr.mxu0 0.0
        %1380 = vmatpush1.msra.mxu0 0.0
        %1381 = vmatprep.subr.mxu0 0.0
        %1382 = vmatpush1.msra.mxu0 0.0
        %1383 = vmatprep.subr.mxu0 0.0
        %1384 = vmatpush1.msra.mxu0 0.0
        %1385 = vmatprep.subr.mxu0 0.0
        %1386 = vmatpush1.msra.mxu0 0.0
        %1387 = vmatprep.subr.mxu0 0.0
        %1388 = vmatpush1.msra.mxu0 0.0
        %1389 = vmatprep.subr.mxu0 0.0
        %1390 = vmatpush1.msra.mxu0 0.0
        %1391 = vmatprep.mubr.f32.mxu0 0.0
        %1392 = vmatmul.mubr.f32.gmra.mrb[0].mxu0 %v1280
        %v1393 = vpop.f32.mrb[0].mxu0
        %v1394 = vadd.f32 0.0, %v1393
        %v1395 = vpop.f32.mrb[0].mxu0
        %1396 = vmatprep.mubr.f32.mxu0 0.0
        %1397 = vmatmul.mubr.f32.gmra.mrb[0].mxu0 %v1283
        %v1398 = vpop.f32.mrb[0].mxu0
        %v1399 = vadd.f32 0.0, %v1398
        %v1400 = vpop.f32.mrb[0].mxu0
        %1401 = vmatprep.mubr.f32.mxu0 0.0
        %1402 = vmatmul.mubr.f32.gmra.mrb[0].mxu0 %v1286
        %v1403 = vpop.f32.mrb[0].mxu0
        %v1404 = vadd.f32 0.0, %v1403
        %v1405 = vpop.f32.mrb[0].mxu0
        %1406 = vmatprep.mubr.f32.mxu0 0.0
        %1407 = vmatmul.mubr.f32.gmra.mrb[0].mxu0 %v1289
        %v1408 = vpop.f32.mrb[0].mxu0
        %v1409 = vadd.f32 0.0, %v1408
        %v1410 = vpop.f32.mrb[0].mxu0
        %1411 = vmatprep.mubr.f32.mxu0 0.0
        %1412 = vmatmul.mubr.f32.gmra.mrb[0].mxu0 %v1292
        %v1413 = vpop.f32.mrb[0].mxu0
        %v1414 = vadd.f32 0.0, %v1413
        %v1415 = vpop.f32.mrb[0].mxu0
        %1416 = vmatprep.mubr.f32.mxu0 0.0
        %1417 = vmatmul.mubr.f32.gmra.mrb[0].mxu0 %v1295
        %v1418 = vpop.f32.mrb[0].mxu0
        %v1419 = vadd.f32 0.0, %v1418
        %v1420 = vpop.f32.mrb[0].mxu0
        %1421 = vmatprep.mubr.f32.mxu0 0.0
        %1422 = vmatmul.mubr.f32.gmra.mrb[0].mxu0 %v1298
        %v1423 = vpop.f32.mrb[0].mxu0
        %v1424 = vadd.f32 0.0, %v1423
        %v1425 = vpop.f32.mrb[0].mxu0
        %1426 = vmatprep.mubr.f32.mxu0 0.0
        %1427 = vmatmul.mubr.f32.gmra.mrb[0].mxu0 %v1301
        %v1428 = vpop.f32.mrb[0].mxu0
        %v1429 = vadd.f32 0.0, %v1428
        %v1430 = vpop.f32.mrb[0].mxu0
        %1431 = vmatprep.mubr.f32.mxu0 0.0
        %1432 = vmatmul.mubr.f32.gmra.mrb[0].mxu0 %v1304
        %v1433 = vpop.f32.mrb[0].mxu0
        %v1434 = vadd.f32 0.0, %v1433
        %v1435 = vpop.f32.mrb[0].mxu0
        %1436 = vmatprep.mubr.f32.mxu0 0.0
        %1437 = vmatmul.mubr.f32.gmra.mrb[0].mxu0 %v1307
        %v1438 = vpop.f32.mrb[0].mxu0
        %v1439 = vadd.f32 0.0, %v1438
        %v1440 = vpop.f32.mrb[0].mxu0
        %1441 = vmatprep.mubr.f32.mxu0 0.0
        %1442 = vmatmul.mubr.f32.gmra.mrb[0].mxu0 %v1310
        %v1443 = vpop.f32.mrb[0].mxu0
        %v1444 = vadd.f32 0.0, %v1443
        %v1445 = vpop.f32.mrb[0].mxu0
        %1446 = vmatprep.mubr.f32.mxu0 0.0
        %1447 = vmatmul.mubr.f32.gmra.mrb[0].mxu0 %v1313
        %v1448 = vpop.f32.mrb[0].mxu0
        %v1449 = vadd.f32 0.0, %v1448
        %v1450 = vpop.f32.mrb[0].mxu0
        %1451 = vmatprep.mubr.f32.mxu0 0.0
        %1452 = vmatmul.mubr.f32.gmra.mrb[0].mxu0 %v1316
        %v1453 = vpop.f32.mrb[0].mxu0
        %v1454 = vadd.f32 0.0, %v1453
        %v1455 = vpop.f32.mrb[0].mxu0
        %1456 = vmatprep.mubr.f32.mxu0 0.0
        %1457 = vmatmul.mubr.f32.gmra.mrb[0].mxu0 %v1319
        %v1458 = vpop.f32.mrb[0].mxu0
        %v1459 = vadd.f32 0.0, %v1458
        %v1460 = vpop.f32.mrb[0].mxu0
        %1461 = vmatprep.mubr.f32.mxu0 0.0
        %1462 = vmatmul.mubr.f32.gmra.mrb[0].mxu0 %v1322
        %v1463 = vpop.f32.mrb[0].mxu0
        %v1464 = vadd.f32 0.0, %v1463
        %v1465 = vpop.f32.mrb[0].mxu0
        %1466 = vmatprep.mubr.f32.mxu0 0.0
        %1467 = vmatmul.mubr.f32.gmra.mrb[0].mxu0 %v1325
        %v1468 = vpop.f32.mrb[0].mxu0
        %v1469 = vadd.f32 0.0, %v1468
        %v1470 = vpop.f32.mrb[0].mxu0
        %1471 = vdwg.mxu0
        %v1472 = vadd.f32 %v1231, %v1394
        %v1473 = vadd.f32 %v1232, %v1399
        %v1474 = vadd.f32 %v1233, %v1404
        %v1475 = vadd.f32 %v1234, %v1409
        %v1476 = vadd.f32 %v1235, %v1414
        %v1477 = vadd.f32 %v1236, %v1419
        %v1478 = vadd.f32 %v1237, %v1424
        %v1479 = vadd.f32 %v1238, %v1429
        %v1480 = vadd.f32 %v1239, %v1434
        %v1481 = vadd.f32 %v1240, %v1439
        %v1482 = vadd.f32 %v1241, %v1444
        %v1483 = vadd.f32 %v1242, %v1449
        %v1484 = vadd.f32 %v1243, %v1454
        %v1485 = vadd.f32 %v1244, %v1459
        %v1486 = vadd.f32 %v1245, %v1464
        %v1487 = vadd.f32 %v1246, %v1469
        %1488 = vst [vmem:[#allocation2] sm:$0xff] %v1472
        %1489 = vst [vmem:[#allocation2 + $0x8] sm:$0xff] %v1473
        %1490 = vst [vmem:[#allocation2 + $0x10] sm:$0xff] %v1474
        %1491 = vst [vmem:[#allocation2 + $0x18] sm:$0xff] %v1475
        %1492 = vst [vmem:[#allocation2 + $0x20] sm:$0xff] %v1476
        %1493 = vst [vmem:[#allocation2 + $0x28] sm:$0xff] %v1477
        %1494 = vst [vmem:[#allocation2 + $0x30] sm:$0xff] %v1478
        %1495 = vst [vmem:[#allocation2 + $0x38] sm:$0xff] %v1479
        %1496 = vst [vmem:[#allocation2 + $0x40] sm:$0xff] %v1480
        %1497 = vst [vmem:[#allocation2 + $0x48] sm:$0xff] %v1481
        %1498 = vst [vmem:[#allocation2 + $0x50] sm:$0xff] %v1482
        %1499 = vst [vmem:[#allocation2 + $0x58] sm:$0xff] %v1483
        %1500 = vst [vmem:[#allocation2 + $0x60] sm:$0xff] %v1484
        %1501 = vst [vmem:[#allocation2 + $0x68] sm:$0xff] %v1485
        %1502 = vst [vmem:[#allocation2 + $0x70] sm:$0xff] %v1486
        %1503 = vst [vmem:[#allocation2 + $0x78] sm:$0xff] %v1487
        %v1504 = vld [vmem:[%s326] sm:$0xff]
        %v1505 = vld [vmem:[%s326 + $0x8] sm:$0xff]
        %v1506 = vpack.c.bf16 %v1505, %v1504
        %v1507 = vld [vmem:[#allocation3] sm:$0xff]
        %v1508 = vld [vmem:[#allocation3 + $0x8] sm:$0xff]
        %v1509 = vld [vmem:[#allocation3 + $0x10] sm:$0xff]
        %v1510 = vld [vmem:[#allocation3 + $0x18] sm:$0xff]
        %v1511 = vld [vmem:[#allocation3 + $0x20] sm:$0xff]
        %v1512 = vld [vmem:[#allocation3 + $0x28] sm:$0xff]
        %v1513 = vld [vmem:[#allocation3 + $0x30] sm:$0xff]
        %v1514 = vld [vmem:[#allocation3 + $0x38] sm:$0xff]
        %v1515 = vld [vmem:[#allocation3 + $0x40] sm:$0xff]
        %v1516 = vld [vmem:[#allocation3 + $0x48] sm:$0xff]
        %v1517 = vld [vmem:[#allocation3 + $0x50] sm:$0xff]
        %v1518 = vld [vmem:[#allocation3 + $0x58] sm:$0xff]
        %v1519 = vld [vmem:[#allocation3 + $0x60] sm:$0xff]
        %v1520 = vld [vmem:[#allocation3 + $0x68] sm:$0xff]
        %v1521 = vld [vmem:[#allocation3 + $0x70] sm:$0xff]
        %v1522 = vld [vmem:[#allocation3 + $0x78] sm:$0xff]
        %v1523 = vpack.c.bf16 %v746, %v643
        %1524 = vxpose.xlu0.c.b16.start [1/8] %v1523, 128
        %1525 = vxpose.xlu0.c.b16.cont [2/8] 0, 128
        %1526 = vxpose.xlu0.c.b16.cont [3/8] 0, 128
        %1527 = vxpose.xlu0.c.b16.cont [4/8] 0, 128
        %1528 = vxpose.xlu0.c.b16.cont [5/8] 0, 128
        %1529 = vxpose.xlu0.c.b16.cont [6/8] 0, 128
        %1530 = vxpose.xlu0.c.b16.cont [7/8] 0, 128
        %1531 = vxpose.xlu0.c.b16.end [8/8] 0, 128
        %v1532 = vpop.trf.xlu0
        %v1533 = vpop.trf.xlu0
        %v1534 = vpop.trf.xlu0
        %v1535 = vpop.trf.xlu0
        %v1536 = vpop.trf.xlu0
        %v1537 = vpop.trf.xlu0
        %v1538 = vpop.trf.xlu0
        %v1539 = vpop.trf.xlu0
        %v1541 = vsel %vm1005, %v1532, 0
        %v1544 = vsel %vm1005, %v1533, 0
        %v1547 = vsel %vm1005, %v1534, 0
        %v1550 = vsel %vm1005, %v1535, 0
        %v1553 = vsel %vm1005, %v1536, 0
        %v1556 = vsel %vm1005, %v1537, 0
        %v1559 = vsel %vm1005, %v1538, 0
        %v1562 = vsel %vm1005, %v1539, 0
        %1564 = vmatprep.subr.bf16.mxu0 0
        %1565 = vmatpush1.bf16.msra.mxu0 %v1506
        %1566 = vmatprep.subr.bf16.mxu0 0
        %1567 = vmatpush1.bf16.msra.mxu0 0
        %1568 = vmatprep.subr.bf16.mxu0 0
        %1569 = vmatpush1.bf16.msra.mxu0 0
        %1570 = vmatprep.subr.bf16.mxu0 0
        %1571 = vmatpush1.bf16.msra.mxu0 0
        %1572 = vmatprep.subr.bf16.mxu0 0
        %1573 = vmatpush1.bf16.msra.mxu0 0
        %1574 = vmatprep.subr.bf16.mxu0 0
        %1575 = vmatpush1.bf16.msra.mxu0 0
        %1576 = vmatprep.subr.bf16.mxu0 0
        %1577 = vmatpush1.bf16.msra.mxu0 0
        %1578 = vmatprep.subr.bf16.mxu0 0
        %1579 = vmatpush1.bf16.msra.mxu0 0
        %1580 = vmatprep.subr.bf16.mxu0 0
        %1581 = vmatpush1.bf16.msra.mxu0 0
        %1582 = vmatprep.subr.bf16.mxu0 0
        %1583 = vmatpush1.bf16.msra.mxu0 0
        %1584 = vmatprep.subr.bf16.mxu0 0
        %1585 = vmatpush1.bf16.msra.mxu0 0
        %1586 = vmatprep.subr.bf16.mxu0 0
        %1587 = vmatpush1.bf16.msra.mxu0 0
        %1588 = vmatprep.subr.bf16.mxu0 0
        %1589 = vmatpush1.bf16.msra.mxu0 0
        %1590 = vmatprep.subr.bf16.mxu0 0
        %1591 = vmatpush1.bf16.msra.mxu0 0
        %1592 = vmatprep.subr.bf16.mxu0 0
        %1593 = vmatpush1.bf16.msra.mxu0 0
        %1594 = vmatprep.subr.bf16.mxu0 0
        %1595 = vmatpush1.bf16.msra.mxu0 0
        %1596 = vmatprep.mubr.bf16.mxu0 0
        %1597 = vmatmul.mubr.bf16.gmra.mrb[0].mxu0 %v1541
        %v1598 = vpop.f32.mrb[0].mxu0
        %v1599 = vadd.f32 0.0, %v1598
        %v1600 = vpop.f32.mrb[0].mxu0
        %v1601 = vpop.f32.mrb[0].mxu0
        %v1602 = vadd.f32 0.0, %v1601
        %v1603 = vpop.f32.mrb[0].mxu0
        %1604 = vmatprep.mubr.bf16.mxu0 0
        %1605 = vmatmul.mubr.bf16.gmra.mrb[0].mxu0 %v1544
        %v1606 = vpop.f32.mrb[0].mxu0
        %v1607 = vadd.f32 0.0, %v1606
        %v1608 = vpop.f32.mrb[0].mxu0
        %v1609 = vpop.f32.mrb[0].mxu0
        %v1610 = vadd.f32 0.0, %v1609
        %v1611 = vpop.f32.mrb[0].mxu0
        %1612 = vmatprep.mubr.bf16.mxu0 0
        %1613 = vmatmul.mubr.bf16.gmra.mrb[0].mxu0 %v1547
        %v1614 = vpop.f32.mrb[0].mxu0
        %v1615 = vadd.f32 0.0, %v1614
        %v1616 = vpop.f32.mrb[0].mxu0
        %v1617 = vpop.f32.mrb[0].mxu0
        %v1618 = vadd.f32 0.0, %v1617
        %v1619 = vpop.f32.mrb[0].mxu0
        %1620 = vmatprep.mubr.bf16.mxu0 0
        %1621 = vmatmul.mubr.bf16.gmra.mrb[0].mxu0 %v1550
        %v1622 = vpop.f32.mrb[0].mxu0
        %v1623 = vadd.f32 0.0, %v1622
        %v1624 = vpop.f32.mrb[0].mxu0
        %v1625 = vpop.f32.mrb[0].mxu0
        %v1626 = vadd.f32 0.0, %v1625
        %v1627 = vpop.f32.mrb[0].mxu0
        %1628 = vmatprep.mubr.bf16.mxu0 0
        %1629 = vmatmul.mubr.bf16.gmra.mrb[0].mxu0 %v1553
        %v1630 = vpop.f32.mrb[0].mxu0
        %v1631 = vadd.f32 0.0, %v1630
        %v1632 = vpop.f32.mrb[0].mxu0
        %v1633 = vpop.f32.mrb[0].mxu0
        %v1634 = vadd.f32 0.0, %v1633
        %v1635 = vpop.f32.mrb[0].mxu0
        %1636 = vmatprep.mubr.bf16.mxu0 0
        %1637 = vmatmul.mubr.bf16.gmra.mrb[0].mxu0 %v1556
        %v1638 = vpop.f32.mrb[0].mxu0
        %v1639 = vadd.f32 0.0, %v1638
        %v1640 = vpop.f32.mrb[0].mxu0
        %v1641 = vpop.f32.mrb[0].mxu0
        %v1642 = vadd.f32 0.0, %v1641
        %v1643 = vpop.f32.mrb[0].mxu0
        %1644 = vmatprep.mubr.bf16.mxu0 0
        %1645 = vmatmul.mubr.bf16.gmra.mrb[0].mxu0 %v1559
        %v1646 = vpop.f32.mrb[0].mxu0
        %v1647 = vadd.f32 0.0, %v1646
        %v1648 = vpop.f32.mrb[0].mxu0
        %v1649 = vpop.f32.mrb[0].mxu0
        %v1650 = vadd.f32 0.0, %v1649
        %v1651 = vpop.f32.mrb[0].mxu0
        %1652 = vmatprep.mubr.bf16.mxu0 0
        %1653 = vmatmul.mubr.bf16.gmra.mrb[0].mxu0 %v1562
        %v1654 = vpop.f32.mrb[0].mxu0
        %v1655 = vadd.f32 0.0, %v1654
        %v1656 = vpop.f32.mrb[0].mxu0
        %v1657 = vpop.f32.mrb[0].mxu0
        %v1658 = vadd.f32 0.0, %v1657
        %v1659 = vpop.f32.mrb[0].mxu0
        %1660 = vdwg.mxu0
        %v1661 = vadd.f32 %v1507, %v1599
        %v1662 = vadd.f32 %v1508, %v1602
        %v1663 = vadd.f32 %v1509, %v1607
        %v1664 = vadd.f32 %v1510, %v1610
        %v1665 = vadd.f32 %v1511, %v1615
        %v1666 = vadd.f32 %v1512, %v1618
        %v1667 = vadd.f32 %v1513, %v1623
        %v1668 = vadd.f32 %v1514, %v1626
        %v1669 = vadd.f32 %v1515, %v1631
        %v1670 = vadd.f32 %v1516, %v1634
        %v1671 = vadd.f32 %v1517, %v1639
        %v1672 = vadd.f32 %v1518, %v1642
        %v1673 = vadd.f32 %v1519, %v1647
        %v1674 = vadd.f32 %v1520, %v1650
        %v1675 = vadd.f32 %v1521, %v1655
        %v1676 = vadd.f32 %v1522, %v1658
        %1677 = vst [vmem:[#allocation3] sm:$0xff] %v1661
        %1678 = vst [vmem:[#allocation3 + $0x8] sm:$0xff] %v1662
        %1679 = vst [vmem:[#allocation3 + $0x10] sm:$0xff] %v1663
        %1680 = vst [vmem:[#allocation3 + $0x18] sm:$0xff] %v1664
        %1681 = vst [vmem:[#allocation3 + $0x20] sm:$0xff] %v1665
        %1682 = vst [vmem:[#allocation3 + $0x28] sm:$0xff] %v1666
        %1683 = vst [vmem:[#allocation3 + $0x30] sm:$0xff] %v1667
        %1684 = vst [vmem:[#allocation3 + $0x38] sm:$0xff] %v1668
        %1685 = vst [vmem:[#allocation3 + $0x40] sm:$0xff] %v1669
        %1686 = vst [vmem:[#allocation3 + $0x48] sm:$0xff] %v1670
        %1687 = vst [vmem:[#allocation3 + $0x50] sm:$0xff] %v1671
        %1688 = vst [vmem:[#allocation3 + $0x58] sm:$0xff] %v1672
        %1689 = vst [vmem:[#allocation3 + $0x60] sm:$0xff] %v1673
        %1690 = vst [vmem:[#allocation3 + $0x68] sm:$0xff] %v1674
        %1691 = vst [vmem:[#allocation3 + $0x70] sm:$0xff] %v1675
        %1692 = vst [vmem:[#allocation3 + $0x78] sm:$0xff] %v1676
        %v1693 = vld [vmem:[#allocation4] sm:$0xff]
        %v1694 = vld [vmem:[#allocation4 + $0x8] sm:$0xff]
        %v1695 = vld [vmem:[#allocation4 + $0x10] sm:$0xff]
        %v1696 = vld [vmem:[#allocation4 + $0x18] sm:$0xff]
        %v1697 = vld [vmem:[#allocation4 + $0x20] sm:$0xff]
        %v1698 = vld [vmem:[#allocation4 + $0x28] sm:$0xff]
        %v1699 = vld [vmem:[#allocation4 + $0x30] sm:$0xff]
        %v1700 = vld [vmem:[#allocation4 + $0x38] sm:$0xff]
        %v1701 = vld [vmem:[#allocation4 + $0x40] sm:$0xff]
        %v1702 = vld [vmem:[#allocation4 + $0x48] sm:$0xff]
        %v1703 = vld [vmem:[#allocation4 + $0x50] sm:$0xff]
        %v1704 = vld [vmem:[#allocation4 + $0x58] sm:$0xff]
        %v1705 = vld [vmem:[#allocation4 + $0x60] sm:$0xff]
        %v1706 = vld [vmem:[#allocation4 + $0x68] sm:$0xff]
        %v1707 = vld [vmem:[#allocation4 + $0x70] sm:$0xff]
        %v1708 = vld [vmem:[#allocation4 + $0x78] sm:$0xff]
        %v1709 = vpack.c.bf16 %v954, %v850
        %1710 = vxpose.xlu0.c.b16.start [1/8] %v1709, 128
        %1711 = vxpose.xlu0.c.b16.cont [2/8] 0, 128
        %1712 = vxpose.xlu0.c.b16.cont [3/8] 0, 128
        %1713 = vxpose.xlu0.c.b16.cont [4/8] 0, 128
        %1714 = vxpose.xlu0.c.b16.cont [5/8] 0, 128
        %1715 = vxpose.xlu0.c.b16.cont [6/8] 0, 128
        %1716 = vxpose.xlu0.c.b16.cont [7/8] 0, 128
        %1717 = vxpose.xlu0.c.b16.end [8/8] 0, 128
        %v1718 = vpop.trf.xlu0
        %v1719 = vpop.trf.xlu0
        %v1720 = vpop.trf.xlu0
        %v1721 = vpop.trf.xlu0
        %v1722 = vpop.trf.xlu0
        %v1723 = vpop.trf.xlu0
        %v1724 = vpop.trf.xlu0
        %v1725 = vpop.trf.xlu0
        %v1727 = vsel %vm1005, %v1718, 0
        %v1730 = vsel %vm1005, %v1719, 0
        %v1733 = vsel %vm1005, %v1720, 0
        %v1736 = vsel %vm1005, %v1721, 0
        %v1739 = vsel %vm1005, %v1722, 0
        %v1742 = vsel %vm1005, %v1723, 0
        %v1745 = vsel %vm1005, %v1724, 0
        %v1748 = vsel %vm1005, %v1725, 0
        %1750 = vmatprep.subr.bf16.mxu0 0
        %1751 = vmatpush1.bf16.msra.mxu0 %v1506
        %1752 = vmatprep.subr.bf16.mxu0 0
        %1753 = vmatpush1.bf16.msra.mxu0 0
        %1754 = vmatprep.subr.bf16.mxu0 0
        %1755 = vmatpush1.bf16.msra.mxu0 0
        %1756 = vmatprep.subr.bf16.mxu0 0
        %1757 = vmatpush1.bf16.msra.mxu0 0
        %1758 = vmatprep.subr.bf16.mxu0 0
        %1759 = vmatpush1.bf16.msra.mxu0 0
        %1760 = vmatprep.subr.bf16.mxu0 0
        %1761 = vmatpush1.bf16.msra.mxu0 0
        %1762 = vmatprep.subr.bf16.mxu0 0
        %1763 = vmatpush1.bf16.msra.mxu0 0
        %1764 = vmatprep.subr.bf16.mxu0 0
        %1765 = vmatpush1.bf16.msra.mxu0 0
        %1766 = vmatprep.subr.bf16.mxu0 0
        %1767 = vmatpush1.bf16.msra.mxu0 0
        %1768 = vmatprep.subr.bf16.mxu0 0
        %1769 = vmatpush1.bf16.msra.mxu0 0
        %1770 = vmatprep.subr.bf16.mxu0 0
        %1771 = vmatpush1.bf16.msra.mxu0 0
        %1772 = vmatprep.subr.bf16.mxu0 0
        %1773 = vmatpush1.bf16.msra.mxu0 0
        %1774 = vmatprep.subr.bf16.mxu0 0
        %1775 = vmatpush1.bf16.msra.mxu0 0
        %1776 = vmatprep.subr.bf16.mxu0 0
        %1777 = vmatpush1.bf16.msra.mxu0 0
        %1778 = vmatprep.subr.bf16.mxu0 0
        %1779 = vmatpush1.bf16.msra.mxu0 0
        %1780 = vmatprep.subr.bf16.mxu0 0
        %1781 = vmatpush1.bf16.msra.mxu0 0
        %1782 = vmatprep.mubr.bf16.mxu0 0
        %1783 = vmatmul.mubr.bf16.gmra.mrb[0].mxu0 %v1727
        %v1784 = vpop.f32.mrb[0].mxu0
        %v1785 = vadd.f32 0.0, %v1784
        %v1786 = vpop.f32.mrb[0].mxu0
        %v1787 = vpop.f32.mrb[0].mxu0
        %v1788 = vadd.f32 0.0, %v1787
        %v1789 = vpop.f32.mrb[0].mxu0
        %1790 = vmatprep.mubr.bf16.mxu0 0
        %1791 = vmatmul.mubr.bf16.gmra.mrb[0].mxu0 %v1730
        %v1792 = vpop.f32.mrb[0].mxu0
        %v1793 = vadd.f32 0.0, %v1792
        %v1794 = vpop.f32.mrb[0].mxu0
        %v1795 = vpop.f32.mrb[0].mxu0
        %v1796 = vadd.f32 0.0, %v1795
        %v1797 = vpop.f32.mrb[0].mxu0
        %1798 = vmatprep.mubr.bf16.mxu0 0
        %1799 = vmatmul.mubr.bf16.gmra.mrb[0].mxu0 %v1733
        %v1800 = vpop.f32.mrb[0].mxu0
        %v1801 = vadd.f32 0.0, %v1800
        %v1802 = vpop.f32.mrb[0].mxu0
        %v1803 = vpop.f32.mrb[0].mxu0
        %v1804 = vadd.f32 0.0, %v1803
        %v1805 = vpop.f32.mrb[0].mxu0
        %1806 = vmatprep.mubr.bf16.mxu0 0
        %1807 = vmatmul.mubr.bf16.gmra.mrb[0].mxu0 %v1736
        %v1808 = vpop.f32.mrb[0].mxu0
        %v1809 = vadd.f32 0.0, %v1808
        %v1810 = vpop.f32.mrb[0].mxu0
        %v1811 = vpop.f32.mrb[0].mxu0
        %v1812 = vadd.f32 0.0, %v1811
        %v1813 = vpop.f32.mrb[0].mxu0
        %1814 = vmatprep.mubr.bf16.mxu0 0
        %1815 = vmatmul.mubr.bf16.gmra.mrb[0].mxu0 %v1739
        %v1816 = vpop.f32.mrb[0].mxu0
        %v1817 = vadd.f32 0.0, %v1816
        %v1818 = vpop.f32.mrb[0].mxu0
        %v1819 = vpop.f32.mrb[0].mxu0
        %v1820 = vadd.f32 0.0, %v1819
        %v1821 = vpop.f32.mrb[0].mxu0
        %1822 = vmatprep.mubr.bf16.mxu0 0
        %1823 = vmatmul.mubr.bf16.gmra.mrb[0].mxu0 %v1742
        %v1824 = vpop.f32.mrb[0].mxu0
        %v1825 = vadd.f32 0.0, %v1824
        %v1826 = vpop.f32.mrb[0].mxu0
        %v1827 = vpop.f32.mrb[0].mxu0
        %v1828 = vadd.f32 0.0, %v1827
        %v1829 = vpop.f32.mrb[0].mxu0
        %1830 = vmatprep.mubr.bf16.mxu0 0
        %1831 = vmatmul.mubr.bf16.gmra.mrb[0].mxu0 %v1745
        %v1832 = vpop.f32.mrb[0].mxu0
        %v1833 = vadd.f32 0.0, %v1832
        %v1834 = vpop.f32.mrb[0].mxu0
        %v1835 = vpop.f32.mrb[0].mxu0
        %v1836 = vadd.f32 0.0, %v1835
        %v1837 = vpop.f32.mrb[0].mxu0
        %1838 = vmatprep.mubr.bf16.mxu0 0
        %1839 = vmatmul.mubr.bf16.gmra.mrb[0].mxu0 %v1748
        %v1840 = vpop.f32.mrb[0].mxu0
        %v1841 = vadd.f32 0.0, %v1840
        %v1842 = vpop.f32.mrb[0].mxu0
        %v1843 = vpop.f32.mrb[0].mxu0
        %v1844 = vadd.f32 0.0, %v1843
        %v1845 = vpop.f32.mrb[0].mxu0
        %1846 = vdwg.mxu0
        %v1847 = vadd.f32 %v1693, %v1785
        %v1848 = vadd.f32 %v1694, %v1788
        %v1849 = vadd.f32 %v1695, %v1793
        %v1850 = vadd.f32 %v1696, %v1796
        %v1851 = vadd.f32 %v1697, %v1801
        %v1852 = vadd.f32 %v1698, %v1804
        %v1853 = vadd.f32 %v1699, %v1809
        %v1854 = vadd.f32 %v1700, %v1812
        %v1855 = vadd.f32 %v1701, %v1817
        %v1856 = vadd.f32 %v1702, %v1820
        %v1857 = vadd.f32 %v1703, %v1825
        %v1858 = vadd.f32 %v1704, %v1828
        %v1859 = vadd.f32 %v1705, %v1833
        %v1860 = vadd.f32 %v1706, %v1836
        %v1861 = vadd.f32 %v1707, %v1841
        %v1862 = vadd.f32 %v1708, %v1844
        %1863 = vst [vmem:[#allocation4] sm:$0xff] %v1847
        %1864 = vst [vmem:[#allocation4 + $0x8] sm:$0xff] %v1848
        %1865 = vst [vmem:[#allocation4 + $0x10] sm:$0xff] %v1849
        %1866 = vst [vmem:[#allocation4 + $0x18] sm:$0xff] %v1850
        %1867 = vst [vmem:[#allocation4 + $0x20] sm:$0xff] %v1851
        %1868 = vst [vmem:[#allocation4 + $0x28] sm:$0xff] %v1852
        %1869 = vst [vmem:[#allocation4 + $0x30] sm:$0xff] %v1853
        %1870 = vst [vmem:[#allocation4 + $0x38] sm:$0xff] %v1854
        %1871 = vst [vmem:[#allocation4 + $0x40] sm:$0xff] %v1855
        %1872 = vst [vmem:[#allocation4 + $0x48] sm:$0xff] %v1856
        %1873 = vst [vmem:[#allocation4 + $0x50] sm:$0xff] %v1857
        %1874 = vst [vmem:[#allocation4 + $0x58] sm:$0xff] %v1858
        %1875 = vst [vmem:[#allocation4 + $0x60] sm:$0xff] %v1859
        %1876 = vst [vmem:[#allocation4 + $0x68] sm:$0xff] %v1860
        %1877 = vst [vmem:[#allocation4 + $0x70] sm:$0xff] %v1861
        %1878 = vst [vmem:[#allocation4 + $0x78] sm:$0xff] %v1862
        // Predicated region
        $region45: #{tpu_custom_call.1} parent=35 // pred_check
          %p1879 = pneg %p422
        $region46: #{tpu_custom_call.1} parent=35 // pred_check_branch
          %1881 = sbr.rel (%p1879) target = $region48
        $region47: #{tpu_custom_call.1} parent=35 // pred_region
          %v1882 = vld [vmem:[%s375] sm:$0xff]
          %v1883 = vld [vmem:[%s375 + $0x8] sm:$0xff]
          %v1884 = vld [vmem:[%s375 + $0x10] sm:$0xff]
          %v1885 = vld [vmem:[%s375 + $0x18] sm:$0xff]
          %v1886 = vld [vmem:[%s375 + $0x20] sm:$0xff]
          %v1887 = vld [vmem:[%s375 + $0x28] sm:$0xff]
          %v1888 = vld [vmem:[%s375 + $0x30] sm:$0xff]
          %v1889 = vld [vmem:[%s375 + $0x38] sm:$0xff]
          %v1890 = vld [vmem:[%s375 + $0x40] sm:$0xff]
          %v1891 = vld [vmem:[%s375 + $0x48] sm:$0xff]
          %v1892 = vld [vmem:[%s375 + $0x50] sm:$0xff]
          %v1893 = vld [vmem:[%s375 + $0x58] sm:$0xff]
          %v1894 = vld [vmem:[%s375 + $0x60] sm:$0xff]
          %v1895 = vld [vmem:[%s375 + $0x68] sm:$0xff]
          %v1896 = vld [vmem:[%s375 + $0x70] sm:$0xff]
          %v1897 = vld [vmem:[%s375 + $0x78] sm:$0xff]
          %v1898 = vld [vmem:[#allocation2] sm:$0xff]
          %v1899 = vld [vmem:[#allocation2 + $0x8] sm:$0xff]
          %v1900 = vld [vmem:[#allocation2 + $0x10] sm:$0xff]
          %v1901 = vld [vmem:[#allocation2 + $0x18] sm:$0xff]
          %v1902 = vld [vmem:[#allocation2 + $0x20] sm:$0xff]
          %v1903 = vld [vmem:[#allocation2 + $0x28] sm:$0xff]
          %v1904 = vld [vmem:[#allocation2 + $0x30] sm:$0xff]
          %v1905 = vld [vmem:[#allocation2 + $0x38] sm:$0xff]
          %v1906 = vld [vmem:[#allocation2 + $0x40] sm:$0xff]
          %v1907 = vld [vmem:[#allocation2 + $0x48] sm:$0xff]
          %v1908 = vld [vmem:[#allocation2 + $0x50] sm:$0xff]
          %v1909 = vld [vmem:[#allocation2 + $0x58] sm:$0xff]
          %v1910 = vld [vmem:[#allocation2 + $0x60] sm:$0xff]
          %v1911 = vld [vmem:[#allocation2 + $0x68] sm:$0xff]
          %v1912 = vld [vmem:[#allocation2 + $0x70] sm:$0xff]
          %v1913 = vld [vmem:[#allocation2 + $0x78] sm:$0xff]
          %v1914 = vmul.f32 %v1882, %v1882
          %v1915 = vmul.f32 %v1883, %v1883
          %v1916 = vmul.f32 %v1884, %v1884
          %v1917 = vmul.f32 %v1885, %v1885
          %v1918 = vmul.f32 %v1886, %v1886
          %v1919 = vmul.f32 %v1887, %v1887
          %v1920 = vmul.f32 %v1888, %v1888
          %v1921 = vmul.f32 %v1889, %v1889
          %v1922 = vmul.f32 %v1890, %v1890
          %v1923 = vmul.f32 %v1891, %v1891
          %v1924 = vmul.f32 %v1892, %v1892
          %v1925 = vmul.f32 %v1893, %v1893
          %v1926 = vmul.f32 %v1894, %v1894
          %v1927 = vmul.f32 %v1895, %v1895
          %v1928 = vmul.f32 %v1896, %v1896
          %v1929 = vmul.f32 %v1897, %v1897
          %v1930 = vmul.f32 %v1898, %v1898
          %v1931 = vmul.f32 %v1899, %v1899
          %v1932 = vmul.f32 %v1900, %v1900
          %v1933 = vmul.f32 %v1901, %v1901
          %v1934 = vmul.f32 %v1902, %v1902
          %v1935 = vmul.f32 %v1903, %v1903
          %v1936 = vmul.f32 %v1904, %v1904
          %v1937 = vmul.f32 %v1905, %v1905
          %v1938 = vmul.f32 %v1906, %v1906
          %v1939 = vmul.f32 %v1907, %v1907
          %v1940 = vmul.f32 %v1908, %v1908
          %v1941 = vmul.f32 %v1909, %v1909
          %v1942 = vmul.f32 %v1910, %v1910
          %v1943 = vmul.f32 %v1911, %v1911
          %v1944 = vmul.f32 %v1912, %v1912
          %v1945 = vmul.f32 %v1913, %v1913
          %v1946 = vadd.f32 %v1914, %v1930
          %v1947 = vadd.f32 %v1915, %v1931
          %v1948 = vadd.f32 %v1916, %v1932
          %v1949 = vadd.f32 %v1917, %v1933
          %v1950 = vadd.f32 %v1918, %v1934
          %v1951 = vadd.f32 %v1919, %v1935
          %v1952 = vadd.f32 %v1920, %v1936
          %v1953 = vadd.f32 %v1921, %v1937
          %v1954 = vadd.f32 %v1922, %v1938
          %v1955 = vadd.f32 %v1923, %v1939
          %v1956 = vadd.f32 %v1924, %v1940
          %v1957 = vadd.f32 %v1925, %v1941
          %v1958 = vadd.f32 %v1926, %v1942
          %v1959 = vadd.f32 %v1927, %v1943
          %v1960 = vadd.f32 %v1928, %v1944
          %v1961 = vadd.f32 %v1929, %v1945
          %v1962 = vrsqrt.pop %v1946
          %v1963 = vmul.f32 %v1946, %v1962
          %vm1964 = vcmp.eq.f32.partialorder %v1946, inf
          %v1965 = vsel %vm1964, %v1946, %v1963
          %vm1966 = vcmp.eq.f32.partialorder %v1946, 0.0
          %v1967 = vand.u32 %v1946, 2147483648
          %v1968 = vsel %vm1966, %v1967, %v1965
          %v1969 = vrsqrt.pop %v1947
          %v1970 = vmul.f32 %v1947, %v1969
          %vm1971 = vcmp.eq.f32.partialorder %v1947, inf
          %v1972 = vsel %vm1971, %v1947, %v1970
          %vm1973 = vcmp.eq.f32.partialorder %v1947, 0.0
          %v1974 = vand.u32 %v1947, 2147483648
          %v1975 = vsel %vm1973, %v1974, %v1972
          %v1976 = vrsqrt.pop %v1948
          %v1977 = vmul.f32 %v1948, %v1976
          %vm1978 = vcmp.eq.f32.partialorder %v1948, inf
          %v1979 = vsel %vm1978, %v1948, %v1977
          %vm1980 = vcmp.eq.f32.partialorder %v1948, 0.0
          %v1981 = vand.u32 %v1948, 2147483648
          %v1982 = vsel %vm1980, %v1981, %v1979
          %v1983 = vrsqrt.pop %v1949
          %v1984 = vmul.f32 %v1949, %v1983
          %vm1985 = vcmp.eq.f32.partialorder %v1949, inf
          %v1986 = vsel %vm1985, %v1949, %v1984
          %vm1987 = vcmp.eq.f32.partialorder %v1949, 0.0
          %v1988 = vand.u32 %v1949, 2147483648
          %v1989 = vsel %vm1987, %v1988, %v1986
          %v1990 = vrsqrt.pop %v1950
          %v1991 = vmul.f32 %v1950, %v1990
          %vm1992 = vcmp.eq.f32.partialorder %v1950, inf
          %v1993 = vsel %vm1992, %v1950, %v1991
          %vm1994 = vcmp.eq.f32.partialorder %v1950, 0.0
          %v1995 = vand.u32 %v1950, 2147483648
          %v1996 = vsel %vm1994, %v1995, %v1993
          %v1997 = vrsqrt.pop %v1951
          %v1998 = vmul.f32 %v1951, %v1997
          %vm1999 = vcmp.eq.f32.partialorder %v1951, inf
          %v2000 = vsel %vm1999, %v1951, %v1998
          %vm2001 = vcmp.eq.f32.partialorder %v1951, 0.0
          %v2002 = vand.u32 %v1951, 2147483648
          %v2003 = vsel %vm2001, %v2002, %v2000
          %v2004 = vrsqrt.pop %v1952
          %v2005 = vmul.f32 %v1952, %v2004
          %vm2006 = vcmp.eq.f32.partialorder %v1952, inf
          %v2007 = vsel %vm2006, %v1952, %v2005
          %vm2008 = vcmp.eq.f32.partialorder %v1952, 0.0
          %v2009 = vand.u32 %v1952, 2147483648
          %v2010 = vsel %vm2008, %v2009, %v2007
          %v2011 = vrsqrt.pop %v1953
          %v2012 = vmul.f32 %v1953, %v2011
          %vm2013 = vcmp.eq.f32.partialorder %v1953, inf
          %v2014 = vsel %vm2013, %v1953, %v2012
          %vm2015 = vcmp.eq.f32.partialorder %v1953, 0.0
          %v2016 = vand.u32 %v1953, 2147483648
          %v2017 = vsel %vm2015, %v2016, %v2014
          %v2018 = vrsqrt.pop %v1954
          %v2019 = vmul.f32 %v1954, %v2018
          %vm2020 = vcmp.eq.f32.partialorder %v1954, inf
          %v2021 = vsel %vm2020, %v1954, %v2019
          %vm2022 = vcmp.eq.f32.partialorder %v1954, 0.0
          %v2023 = vand.u32 %v1954, 2147483648
          %v2024 = vsel %vm2022, %v2023, %v2021
          %v2025 = vrsqrt.pop %v1955
          %v2026 = vmul.f32 %v1955, %v2025
          %vm2027 = vcmp.eq.f32.partialorder %v1955, inf
          %v2028 = vsel %vm2027, %v1955, %v2026
          %vm2029 = vcmp.eq.f32.partialorder %v1955, 0.0
          %v2030 = vand.u32 %v1955, 2147483648
          %v2031 = vsel %vm2029, %v2030, %v2028
          %v2032 = vrsqrt.pop %v1956
          %v2033 = vmul.f32 %v1956, %v2032
          %vm2034 = vcmp.eq.f32.partialorder %v1956, inf
          %v2035 = vsel %vm2034, %v1956, %v2033
          %vm2036 = vcmp.eq.f32.partialorder %v1956, 0.0
          %v2037 = vand.u32 %v1956, 2147483648
          %v2038 = vsel %vm2036, %v2037, %v2035
          %v2039 = vrsqrt.pop %v1957
          %v2040 = vmul.f32 %v1957, %v2039
          %vm2041 = vcmp.eq.f32.partialorder %v1957, inf
          %v2042 = vsel %vm2041, %v1957, %v2040
          %vm2043 = vcmp.eq.f32.partialorder %v1957, 0.0
          %v2044 = vand.u32 %v1957, 2147483648
          %v2045 = vsel %vm2043, %v2044, %v2042
          %v2046 = vrsqrt.pop %v1958
          %v2047 = vmul.f32 %v1958, %v2046
          %vm2048 = vcmp.eq.f32.partialorder %v1958, inf
          %v2049 = vsel %vm2048, %v1958, %v2047
          %vm2050 = vcmp.eq.f32.partialorder %v1958, 0.0
          %v2051 = vand.u32 %v1958, 2147483648
          %v2052 = vsel %vm2050, %v2051, %v2049
          %v2053 = vrsqrt.pop %v1959
          %v2054 = vmul.f32 %v1959, %v2053
          %vm2055 = vcmp.eq.f32.partialorder %v1959, inf
          %v2056 = vsel %vm2055, %v1959, %v2054
          %vm2057 = vcmp.eq.f32.partialorder %v1959, 0.0
          %v2058 = vand.u32 %v1959, 2147483648
          %v2059 = vsel %vm2057, %v2058, %v2056
          %v2060 = vrsqrt.pop %v1960
          %v2061 = vmul.f32 %v1960, %v2060
          %vm2062 = vcmp.eq.f32.partialorder %v1960, inf
          %v2063 = vsel %vm2062, %v1960, %v2061
          %vm2064 = vcmp.eq.f32.partialorder %v1960, 0.0
          %v2065 = vand.u32 %v1960, 2147483648
          %v2066 = vsel %vm2064, %v2065, %v2063
          %v2067 = vrsqrt.pop %v1961
          %v2068 = vmul.f32 %v1961, %v2067
          %vm2069 = vcmp.eq.f32.partialorder %v1961, inf
          %v2070 = vsel %vm2069, %v1961, %v2068
          %vm2071 = vcmp.eq.f32.partialorder %v1961, 0.0
          %v2072 = vand.u32 %v1961, 2147483648
          %v2073 = vsel %vm2071, %v2072, %v2070
          %2074 = vst [vmem:[%s375] sm:$0xff] %v1968
          %2075 = vst [vmem:[%s375 + $0x8] sm:$0xff] %v1975
          %2076 = vst [vmem:[%s375 + $0x10] sm:$0xff] %v1982
          %2077 = vst [vmem:[%s375 + $0x18] sm:$0xff] %v1989
          %2078 = vst [vmem:[%s375 + $0x20] sm:$0xff] %v1996
          %2079 = vst [vmem:[%s375 + $0x28] sm:$0xff] %v2003
          %2080 = vst [vmem:[%s375 + $0x30] sm:$0xff] %v2010
          %2081 = vst [vmem:[%s375 + $0x38] sm:$0xff] %v2017
          %2082 = vst [vmem:[%s375 + $0x40] sm:$0xff] %v2024
          %2083 = vst [vmem:[%s375 + $0x48] sm:$0xff] %v2031
          %2084 = vst [vmem:[%s375 + $0x50] sm:$0xff] %v2038
          %2085 = vst [vmem:[%s375 + $0x58] sm:$0xff] %v2045
          %2086 = vst [vmem:[%s375 + $0x60] sm:$0xff] %v2052
          %2087 = vst [vmem:[%s375 + $0x68] sm:$0xff] %v2059
          %2088 = vst [vmem:[%s375 + $0x70] sm:$0xff] %v2066
          %2089 = vst [vmem:[%s375 + $0x78] sm:$0xff] %v2073
          %v2090 = vld [vmem:[#allocation3] sm:$0xff]
          %v2091 = vld [vmem:[#allocation3 + $0x8] sm:$0xff]
          %v2092 = vld [vmem:[#allocation3 + $0x10] sm:$0xff]
          %v2093 = vld [vmem:[#allocation3 + $0x18] sm:$0xff]
          %v2094 = vld [vmem:[#allocation3 + $0x20] sm:$0xff]
          %v2095 = vld [vmem:[#allocation3 + $0x28] sm:$0xff]
          %v2096 = vld [vmem:[#allocation3 + $0x30] sm:$0xff]
          %v2097 = vld [vmem:[#allocation3 + $0x38] sm:$0xff]
          %v2098 = vld [vmem:[#allocation3 + $0x40] sm:$0xff]
          %v2099 = vld [vmem:[#allocation3 + $0x48] sm:$0xff]
          %v2100 = vld [vmem:[#allocation3 + $0x50] sm:$0xff]
          %v2101 = vld [vmem:[#allocation3 + $0x58] sm:$0xff]
          %v2102 = vld [vmem:[#allocation3 + $0x60] sm:$0xff]
          %v2103 = vld [vmem:[#allocation3 + $0x68] sm:$0xff]
          %v2104 = vld [vmem:[#allocation3 + $0x70] sm:$0xff]
          %v2105 = vld [vmem:[#allocation3 + $0x78] sm:$0xff]
          %v2106 = vpack.c.bf16 %v2091, %v2090
          %v2107 = vpack.c.bf16 %v2093, %v2092
          %v2108 = vpack.c.bf16 %v2095, %v2094
          %v2109 = vpack.c.bf16 %v2097, %v2096
          %v2110 = vpack.c.bf16 %v2099, %v2098
          %v2111 = vpack.c.bf16 %v2101, %v2100
          %v2112 = vpack.c.bf16 %v2103, %v2102
          %v2113 = vpack.c.bf16 %v2105, %v2104
          %v2122 = vunpack.c.l.b16 %v2106
          %v2123 = vunpack.c.h.b16 %v2106
          %v2124 = vunpack.c.l.b16 %v2107
          %v2125 = vunpack.c.h.b16 %v2107
          %v2126 = vunpack.c.l.b16 %v2108
          %v2127 = vunpack.c.h.b16 %v2108
          %v2128 = vunpack.c.l.b16 %v2109
          %v2129 = vunpack.c.h.b16 %v2109
          %v2130 = vunpack.c.l.b16 %v2110
          %v2131 = vunpack.c.h.b16 %v2110
          %v2132 = vunpack.c.l.b16 %v2111
          %v2133 = vunpack.c.h.b16 %v2111
          %v2134 = vunpack.c.l.b16 %v2112
          %v2135 = vunpack.c.h.b16 %v2112
          %v2136 = vunpack.c.l.b16 %v2113
          %v2137 = vunpack.c.h.b16 %v2113
          %v2138 = vpack.c.b16 %v2122, %v2122
          %v2139 = vpack.c.b16 %v2123, %v2123
          %v2140 = vpack.c.b16 %v2124, %v2124
          %v2141 = vpack.c.b16 %v2125, %v2125
          %v2142 = vpack.c.b16 %v2126, %v2126
          %v2143 = vpack.c.b16 %v2127, %v2127
          %v2144 = vpack.c.b16 %v2128, %v2128
          %v2145 = vpack.c.b16 %v2129, %v2129
          %v2146 = vpack.c.b16 %v2130, %v2130
          %v2147 = vpack.c.b16 %v2131, %v2131
          %v2148 = vpack.c.b16 %v2132, %v2132
          %v2149 = vpack.c.b16 %v2133, %v2133
          %v2150 = vpack.c.b16 %v2134, %v2134
          %v2151 = vpack.c.b16 %v2135, %v2135
          %v2152 = vpack.c.b16 %v2136, %v2136
          %v2153 = vpack.c.b16 %v2137, %v2137
          %2170 = vst [vmem:[%s382] sm:$0xf] %v2138
          %2171 = vst [vmem:[%s382 + $0x4] sm:$0xf] %v2139
          %2172 = vst [vmem:[%s382 + $0x8] sm:$0xf] %v2140
          %2173 = vst [vmem:[%s382 + $0xc] sm:$0xf] %v2141
          %2174 = vst [vmem:[%s382 + $0x10] sm:$0xf] %v2142
          %2175 = vst [vmem:[%s382 + $0x14] sm:$0xf] %v2143
          %2176 = vst [vmem:[%s382 + $0x18] sm:$0xf] %v2144
          %2177 = vst [vmem:[%s382 + $0x1c] sm:$0xf] %v2145
          %2178 = vst [vmem:[%s382 + $0x20] sm:$0xf] %v2146
          %2179 = vst [vmem:[%s382 + $0x24] sm:$0xf] %v2147
          %2180 = vst [vmem:[%s382 + $0x28] sm:$0xf] %v2148
          %2181 = vst [vmem:[%s382 + $0x2c] sm:$0xf] %v2149
          %2182 = vst [vmem:[%s382 + $0x30] sm:$0xf] %v2150
          %2183 = vst [vmem:[%s382 + $0x34] sm:$0xf] %v2151
          %2184 = vst [vmem:[%s382 + $0x38] sm:$0xf] %v2152
          %2185 = vst [vmem:[%s382 + $0x3c] sm:$0xf] %v2153
          %v2186 = vld [vmem:[#allocation4] sm:$0xff]
          %v2187 = vld [vmem:[#allocation4 + $0x8] sm:$0xff]
          %v2188 = vld [vmem:[#allocation4 + $0x10] sm:$0xff]
          %v2189 = vld [vmem:[#allocation4 + $0x18] sm:$0xff]
          %v2190 = vld [vmem:[#allocation4 + $0x20] sm:$0xff]
          %v2191 = vld [vmem:[#allocation4 + $0x28] sm:$0xff]
          %v2192 = vld [vmem:[#allocation4 + $0x30] sm:$0xff]
          %v2193 = vld [vmem:[#allocation4 + $0x38] sm:$0xff]
          %v2194 = vld [vmem:[#allocation4 + $0x40] sm:$0xff]
          %v2195 = vld [vmem:[#allocation4 + $0x48] sm:$0xff]
          %v2196 = vld [vmem:[#allocation4 + $0x50] sm:$0xff]
          %v2197 = vld [vmem:[#allocation4 + $0x58] sm:$0xff]
          %v2198 = vld [vmem:[#allocation4 + $0x60] sm:$0xff]
          %v2199 = vld [vmem:[#allocation4 + $0x68] sm:$0xff]
          %v2200 = vld [vmem:[#allocation4 + $0x70] sm:$0xff]
          %v2201 = vld [vmem:[#allocation4 + $0x78] sm:$0xff]
          %v2202 = vpack.c.bf16 %v2187, %v2186
          %v2203 = vpack.c.bf16 %v2189, %v2188
          %v2204 = vpack.c.bf16 %v2191, %v2190
          %v2205 = vpack.c.bf16 %v2193, %v2192
          %v2206 = vpack.c.bf16 %v2195, %v2194
          %v2207 = vpack.c.bf16 %v2197, %v2196
          %v2208 = vpack.c.bf16 %v2199, %v2198
          %v2209 = vpack.c.bf16 %v2201, %v2200
          %v2218 = vunpack.c.l.b16 %v2202
          %v2219 = vunpack.c.h.b16 %v2202
          %v2220 = vunpack.c.l.b16 %v2203
          %v2221 = vunpack.c.h.b16 %v2203
          %v2222 = vunpack.c.l.b16 %v2204
          %v2223 = vunpack.c.h.b16 %v2204
          %v2224 = vunpack.c.l.b16 %v2205
          %v2225 = vunpack.c.h.b16 %v2205
          %v2226 = vunpack.c.l.b16 %v2206
          %v2227 = vunpack.c.h.b16 %v2206
          %v2228 = vunpack.c.l.b16 %v2207
          %v2229 = vunpack.c.h.b16 %v2207
          %v2230 = vunpack.c.l.b16 %v2208
          %v2231 = vunpack.c.h.b16 %v2208
          %v2232 = vunpack.c.l.b16 %v2209
          %v2233 = vunpack.c.h.b16 %v2209
          %v2234 = vpack.c.b16 %v2218, %v2218
          %v2235 = vpack.c.b16 %v2219, %v2219
          %v2236 = vpack.c.b16 %v2220, %v2220
          %v2237 = vpack.c.b16 %v2221, %v2221
          %v2238 = vpack.c.b16 %v2222, %v2222
          %v2239 = vpack.c.b16 %v2223, %v2223
          %v2240 = vpack.c.b16 %v2224, %v2224
          %v2241 = vpack.c.b16 %v2225, %v2225
          %v2242 = vpack.c.b16 %v2226, %v2226
          %v2243 = vpack.c.b16 %v2227, %v2227
          %v2244 = vpack.c.b16 %v2228, %v2228
          %v2245 = vpack.c.b16 %v2229, %v2229
          %v2246 = vpack.c.b16 %v2230, %v2230
          %v2247 = vpack.c.b16 %v2231, %v2231
          %v2248 = vpack.c.b16 %v2232, %v2232
          %v2249 = vpack.c.b16 %v2233, %v2233
          %2266 = vst [vmem:[%s389] sm:$0xf] %v2234
          %2267 = vst [vmem:[%s389 + $0x4] sm:$0xf] %v2235
          %2268 = vst [vmem:[%s389 + $0x8] sm:$0xf] %v2236
          %2269 = vst [vmem:[%s389 + $0xc] sm:$0xf] %v2237
          %2270 = vst [vmem:[%s389 + $0x10] sm:$0xf] %v2238
          %2271 = vst [vmem:[%s389 + $0x14] sm:$0xf] %v2239
          %2272 = vst [vmem:[%s389 + $0x18] sm:$0xf] %v2240
          %2273 = vst [vmem:[%s389 + $0x1c] sm:$0xf] %v2241
          %2274 = vst [vmem:[%s389 + $0x20] sm:$0xf] %v2242
          %2275 = vst [vmem:[%s389 + $0x24] sm:$0xf] %v2243
          %2276 = vst [vmem:[%s389 + $0x28] sm:$0xf] %v2244
          %2277 = vst [vmem:[%s389 + $0x2c] sm:$0xf] %v2245
          %2278 = vst [vmem:[%s389 + $0x30] sm:$0xf] %v2246
          %2279 = vst [vmem:[%s389 + $0x34] sm:$0xf] %v2247
          %2280 = vst [vmem:[%s389 + $0x38] sm:$0xf] %v2248
          %2281 = vst [vmem:[%s389 + $0x3c] sm:$0xf] %v2249
        $region48: #{tpu_custom_call.1} parent=35 // pred_fallthru
          _
        %s2282 = sand.u32 %s168, 1
        %s2283 = scalar_lea.sflag [#allocation7], %s2282
        %s2284 = sand.u32 %s168, 1
        %s2285 = smul.addr %s2284, 128
        %s2286 = scalar_lea.vmem [#allocation8], %s2285
        %s2287 = sand.u32 %s27, 1
        %s2288 = scalar_lea.sflag [#allocation10], %s2287
        %s2289 = sand.u32 %s196, 1
        %s2290 = smul.addr %s2289, 64
        %s2291 = scalar_lea.vmem [#allocation9], %s2290
        %s2292 = sand.u32 %s27, 1
        %s2293 = scalar_lea.sflag [#allocation10], %s2292
        %s2294 = sand.u32 %s224, 1
        %s2295 = smul.addr %s2294, 64
        %s2296 = scalar_lea.vmem [#allocation11], %s2295
        // Predicated region
        $region49: #{tpu_custom_call.1} parent=35 // pred_check
          %p2297 = pneg %p178
        $region50: #{tpu_custom_call.1} parent=35 // pred_check_branch
          %2299 = sbr.rel (%p2297) target = $region52
        $region51: #{tpu_custom_call.1} parent=35 // pred_region
          %s2300 = smul.u32 16, %s33
          %s2302 = ssub.s32 2048, 2048
          %2303 = vsyncadd %s2283, %s2302
          %s2304 = smul.addr %s32, 16
          %s2305 = sadd.s32 %s2300, %s2304
          %s2306 = smul.addr %s2305, 128
          %s2307 = scalar_lea.hbm %s4, %s2306
          %s2308 = sshll.u32 %s2286, 4
          %s2309 = int_to_ptr.vmem [resolvable:$true] %s2308
          %2314 = dma.vmem_to_hbm [thread:$0]  %s2309, 2048, %s2307, %s2283, 128, 128, 8
        $region52: #{tpu_custom_call.1} parent=35 // pred_fallthru
          _
        // Predicated region
        $region53: #{tpu_custom_call.1} parent=35 // pred_check
          %p2315 = pneg %p206
        $region54: #{tpu_custom_call.1} parent=35 // pred_check_branch
          %2317 = sbr.rel (%p2315) target = $region56
        $region55: #{tpu_custom_call.1} parent=35 // pred_region
          %s2318 = smul.u32 16, %s33
          %s2320 = ssub.s32 1024, 1024
          %2321 = vsyncadd %s2288, %s2320
          %s2322 = smul.addr %s32, 16
          %s2323 = sadd.s32 %s2318, %s2322
          %s2324 = smul.addr %s2323, 64
          %s2325 = scalar_lea.hbm %s5, %s2324
          %s2326 = sshll.u32 %s2291, 4
          %s2327 = int_to_ptr.vmem [resolvable:$true] %s2326
          %2332 = dma.vmem_to_hbm [thread:$0]  %s2327, 1024, %s2325, %s2288, 64, 64, 4
        $region56: #{tpu_custom_call.1} parent=35 // pred_fallthru
          _
        // Predicated region
        $region57: #{tpu_custom_call.1} parent=35 // pred_check
          %p2333 = pneg %p234
        $region58: #{tpu_custom_call.1} parent=35 // pred_check_branch
          %2335 = sbr.rel (%p2333) target = $region60
        $region59: #{tpu_custom_call.1} parent=35 // pred_region
          %s2336 = smul.u32 16, %s33
          %s2338 = ssub.s32 1024, 1024
          %2339 = vsyncadd %s2293, %s2338
          %s2340 = smul.addr %s32, 16
          %s2341 = sadd.s32 %s2336, %s2340
          %s2342 = smul.addr %s2341, 64
          %s2343 = scalar_lea.hbm %s6, %s2342
          %s2344 = sshll.u32 %s2296, 4
          %s2345 = int_to_ptr.vmem [resolvable:$true] %s2344
          %2350 = dma.vmem_to_hbm [thread:$0]  %s2345, 1024, %s2343, %s2293, 64, 64, 4
        $region60: #{tpu_custom_call.1} parent=35 // pred_fallthru
          _
      $region36: #{tpu_custom_call.1} parent=5 // pred_fallthru
        _
      %p2351 = scmp.le.s32.totalorder 2, %s22
      // Predicated region
      $region61: #{tpu_custom_call.1} parent=5 // pred_check
        %p2352 = pneg %p2351
      $region62: #{tpu_custom_call.1} parent=5 // pred_check_branch
        %2354 = sbr.rel (%p2352) target = $region64
      $region63: #{tpu_custom_call.1} parent=5 // pred_region
        %s2355 = ssub.s32 %s22, 2
        // Predicated region
        $region65: #{tpu_custom_call.1} parent=63 // pred_check
          %p2356 = pneg %p184
        $region66: #{tpu_custom_call.1} parent=63 // pred_check_branch
          %2358 = sbr.rel (%p2356) target = $region68
        $region67: #{tpu_custom_call.1} parent=63 // pred_region
          %s2359 = sand.u32 %s169, 1
          %s2360 = scalar_lea.sflag [#allocation7], %s2359
          %s2361 = sand.u32 %s169, 1
          %s2362 = smul.addr %s2361, 128
          %s2363 = scalar_lea.vmem [#allocation8], %s2362
          %2364 = dma.done %s2360, 2048
        $region68: #{tpu_custom_call.1} parent=63 // pred_fallthru
          _
        // Predicated region
        $region69: #{tpu_custom_call.1} parent=63 // pred_check
          %p2365 = pneg %p212
        $region70: #{tpu_custom_call.1} parent=63 // pred_check_branch
          %2367 = sbr.rel (%p2365) target = $region72
        $region71: #{tpu_custom_call.1} parent=63 // pred_region
          %s2368 = sand.u32 %s28, 1
          %s2369 = scalar_lea.sflag [#allocation10], %s2368
          %s2370 = sand.u32 %s197, 1
          %s2371 = smul.addr %s2370, 64
          %s2372 = scalar_lea.vmem [#allocation9], %s2371
          %2373 = dma.done %s2369, 1024
        $region72: #{tpu_custom_call.1} parent=63 // pred_fallthru
          _
        // Predicated region
        $region73: #{tpu_custom_call.1} parent=63 // pred_check
          %p2374 = pneg %p240
        $region74: #{tpu_custom_call.1} parent=63 // pred_check_branch
          %2376 = sbr.rel (%p2374) target = $region76
        $region75: #{tpu_custom_call.1} parent=63 // pred_region
          %s2377 = sand.u32 %s28, 1
          %s2378 = scalar_lea.sflag [#allocation10], %s2377
          %s2379 = sand.u32 %s225, 1
          %s2380 = smul.addr %s2379, 64
          %s2381 = scalar_lea.vmem [#allocation11], %s2380
          %2382 = dma.done %s2378, 1024
        $region76: #{tpu_custom_call.1} parent=63 // pred_fallthru
          _
      $region64: #{tpu_custom_call.1} parent=5 // pred_fallthru
        _
    $region6: #{tpu_custom_call.1} parent=1 // loop_footer
      %s26 = sadd.s32 1, %s22
    $region7: #{tpu_custom_call.1} parent=1 // loop_footer_branch
      %21 = sbr.rel target = $region3
    $region8: #{tpu_custom_call.1} parent=1 // loop_exit
      _
    %2383 = vsyncpa [#allocation6], 1
    %s2384 = scalar_lea.sflag [#allocation6], 1
    %2385 = vsyncpa %s2384, 1
    %2386 = vsyncpa [#allocation7], 1
    %s2387 = scalar_lea.sflag [#allocation7], 1
    %2388 = vsyncpa %s2387, 1
    %2389 = vsyncpa [#allocation10], 1
    %s2390 = scalar_lea.sflag [#allocation10], 1
    %2391 = vsyncpa %s2390, 1

</llo_original>
